<compile_context>
chip_gen: v5e
topology: v5e:2x2
jax: 0.10.0
libtpu: 0.0.40
codegen_flags: <defaults>
</compile_context>

<pallas_src>
import jax
import jax.numpy as jnp
from jax.experimental import pallas as pl
from jax.experimental.pallas import tpu as pltpu


# ----------------------------------------------------------------------------
# VMEM budgets (generation aware)
# ----------------------------------------------------------------------------
def _vmem_budgets():
    """Returns (vmem_limit_bytes, block_budget_bytes)."""
    try:
        info = pltpu.get_tpu_info()
        cap = int(getattr(info, "vmem_capacity_bytes", 128 * 1024 * 1024))
    except Exception:
        cap = 128 * 1024 * 1024
    if cap >= 96 * 1024 * 1024:            # 128 MiB parts: v5e / v6e
        return 96 * 1024 * 1024, 48 * 1024 * 1024
    return 40 * 1024 * 1024, 16 * 1024 * 1024   # 64 MiB parts: v7x


def _pick_pixel_tile(hw, c_in, feat_bytes, n_heads, ht, k_total, sum_kch,
                     out_bytes, block_budget):
    """Largest pixel tile that divides HW and fits the block VMEM budget."""
    chunk_guess = 1024
    # resident weights (double-buffered) + chunk-sized f32 intermediates
    fixed = (2 * ((ht * c_in + sum_kch) * feat_bytes + (ht + k_total) * 4)
             + chunk_guess * (ht + 3 * k_total) * 4
             + n_heads * 2 * 128 * 4)
    per_px = feat_bytes * c_in + 4 * n_heads + out_bytes * k_total
    for tp in (8192, 4096, 2048, 1024, 512, 256, 128):
        if hw % tp:
            continue
        if 2 * tp * per_px + fixed <= block_budget:
            return tp
    # HW not a multiple of 128 (or tiny): use the full row; Mosaic pads lanes.
    return hw


def _balance_grid(n, hw, tp):
    """Keep N*num_tiles even and >= 2 so both v7x TensorCores are busy."""
    grid = n * (hw // tp)
    if grid >= 2 and grid % 2 == 0:
        return tp
    half = tp // 2
    if half >= 128 and hw % half == 0:
        return half
    return tp


# ----------------------------------------------------------------------------
# Fused multi-head kernel over one (batch, pixel-tile) grid cell.
#
# Ref layout (channel-major, pixels on the lane axis):
#   x_ref                : (C, TP)           features (compute dtype)
#   gt_ref[h]            : (1, TP)   int32   per-pixel target bin index
#   w1p/b1p              : (HT, C) / (HT, 1) packed layer-1 of all heads
#   w2t/b2 [h]           : (K, CH) / (K, 1)  per-head layer-2
#   logits_ref[h]        : (K, TP)           per-pixel logits
#   loss_ref[h]          : (1, 128) f32      lane0 = sum(CE), lane1 = #valid
# ----------------------------------------------------------------------------
def _make_kernel(n_heads, head_offsets, head_hidden, chunk, n_chunks, unroll):
    def kernel(*refs):
        x_ref = refs[0]
        gt_refs = refs[1:1 + n_heads]
        w1p_ref = refs[1 + n_heads]
        b1p_ref = refs[2 + n_heads]
        w2b = refs[3 + n_heads:3 + n_heads + 2 * n_heads]
        o0 = 3 + 3 * n_heads
        logits_refs = refs[o0:o0 + n_heads]
        loss_refs = refs[o0 + n_heads:o0 + 2 * n_heads]

        cdt = x_ref.dtype
        # small, grid-invariant parameters: load once, stay resident
        w1p = w1p_ref[...]                               # (HT, C)  compute dtype
        b1p = b1p_ref[...].astype(jnp.float32)           # (HT, 1)
        w2s = [w2b[2 * i][...] for i in range(n_heads)]  # (K, CH)  compute dtype
        b2s = [w2b[2 * i + 1][...].astype(jnp.float32) for i in range(n_heads)]

        def body(ci, carry):
            off = pl.multiple_of(ci * chunk, chunk)
            x = x_ref[:, pl.ds(off, chunk)]                      # (C, chunk)

            # merged layer-1 (all heads): (HT, C) @ (C, chunk) -> (HT, chunk)
            h_all = jnp.dot(w1p, x, preferred_element_type=jnp.float32)
            h_all = jnp.maximum(h_all + b1p, 0.0)

            out = []
            for hi in range(n_heads):
                ho, hc = head_offsets[hi], head_hidden[hi]
                h = h_all[ho:ho + hc].astype(cdt)                # (CH, chunk)

                # layer-2: (K, CH) @ (CH, chunk) -> (K, chunk)
                logits = jnp.dot(w2s[hi], h,
                                 preferred_element_type=jnp.float32)
                logits = logits + b2s[hi]
                logits_refs[hi][:, pl.ds(off, chunk)] = logits.astype(
                    logits_refs[hi].dtype)

                # per-pixel softmax cross-entropy over the K (sublane) axis
                gt = gt_refs[hi][:, pl.ds(off, chunk)]           # (1, chunk)
                k = logits.shape[0]
                m = jnp.max(logits, axis=0, keepdims=True)
                lse = jnp.log(jnp.sum(jnp.exp(logits - m),
                                      axis=0, keepdims=True)) + m
                kids = jax.lax.broadcasted_iota(jnp.int32, logits.shape, 0)
                onehot = (kids == gt).astype(jnp.float32)
                tgt = jnp.sum(logits * onehot, axis=0, keepdims=True)
                valid = jnp.logical_and(gt >= 0, gt < k)         # ignore-label
                ce = jnp.where(valid, lse - tgt, 0.0)

                out.append(carry[2 * hi] + jnp.sum(ce))
                out.append(carry[2 * hi + 1]
                           + jnp.sum(valid.astype(jnp.float32)))
            return tuple(out)

        init = tuple(jnp.zeros((), jnp.float32) for _ in range(2 * n_heads))
        totals = jax.lax.fori_loop(0, n_chunks, body, init, unroll=unroll)

        lane = jax.lax.broadcasted_iota(jnp.int32, (1, 128), 1)
        for hi in range(n_heads):
            loss_refs[hi][...] = jnp.where(
                lane == 0, totals[2 * hi],
                jnp.where(lane == 1, totals[2 * hi + 1], 0.0))
    return kernel


# ----------------------------------------------------------------------------
# Wrapper: pack parameters, pick tiles, launch one fused pallas_call.
# ----------------------------------------------------------------------------
def _run_heads(features, gt_list, params_list, compute_dtype, logits_dtype):
    """features: (N, C, H, W). gt_list[h]: (N, H, W) int. params_list[h]: dict
    with transposed weights w1t (CH,C), b1 (CH,1), w2t (K,CH), b2 (K,1).
    Returns ([logits_h (N,K,H,W)], [mean CE_h])."""
    N, C, H, W = features.shape
    HW = H * W
    n_heads = len(params_list)

    cdt = compute_dtype
    out_dtype = logits_dtype if logits_dtype is not None else jnp.bfloat16

    # NCHW -> (N, C, HW): contiguous merge, pixels land on lanes; cast once.
    x = features.reshape(N, C, HW).astype(cdt)
    gts = [g.reshape(N, 1, HW).astype(jnp.int32) for g in gt_list]

    # pack every head's first layer into one (HT, C) weight (8-aligned rows)
    offs, hids, ks, w1_rows, b1_rows = [], [], [], [], []
    off = 0
    for p in params_list:
        ch, k = int(p["w1t"].shape[0]), int(p["w2t"].shape[0])
        ch_pad = -(-ch // 8) * 8
        offs.append(off)
        hids.append(ch)
        ks.append(k)
        w1 = p["w1t"].astype(cdt)
        b1 = p["b1"].astype(jnp.float32)
        if ch_pad != ch:
            w1 = jnp.pad(w1, ((0, ch_pad - ch), (0, 0)))
            b1 = jnp.pad(b1, ((0, ch_pad - ch), (0, 0)))
        w1_rows.append(w1)
        b1_rows.append(b1)
        off += ch_pad
    HT = off
    w1p = jnp.concatenate(w1_rows, axis=0)            # (HT, C)
    b1p = jnp.concatenate(b1_rows, axis=0)            # (HT, 1)
    w2b = []
    for p in params_list:
        w2b.append(p["w2t"].astype(cdt))              # (K, CH)
        w2b.append(p["b2"].astype(jnp.float32))       # (K, 1)

    # ---- tile / chunk selection ---------------------------------------------
    feat_bytes = jnp.dtype(cdt).itemsize
    out_bytes = jnp.dtype(out_dtype).itemsize
    vmem_limit, block_budget = _vmem_budgets()
    sum_kch = sum(k * c for k, c in zip(ks, hids))
    tp = _pick_pixel_tile(HW, C, feat_bytes, n_heads, HT, sum(ks), sum_kch,
                          out_bytes, block_budget)
    tp = _balance_grid(N, HW, tp)
    num_tiles = HW // tp

    chunk = tp
    for c in (1024, 512, 256, 128):
        if tp % c == 0:
            chunk = c
            break
    n_chunks = tp // chunk

    # ---- specs ---------------------------------------------------------------
    in_specs = [pl.BlockSpec((None, C, tp), lambda n, t: (n, 0, t))]          # x
    in_specs += [pl.BlockSpec((None, 1, tp), lambda n, t: (n, 0, t))] * n_heads
    in_specs.append(pl.BlockSpec(w1p.shape, lambda n, t: (0, 0)))
    in_specs.append(pl.BlockSpec(b1p.shape, lambda n, t: (0, 0)))
    for w in w2b:
        in_specs.append(pl.BlockSpec(w.shape, lambda n, t: (0, 0)))

    out_shape = tuple(
        [jax.ShapeDtypeStruct((N, k, HW), out_dtype) for k in ks]
        + [jax.ShapeDtypeStruct((N, num_tiles, 1, 128), jnp.float32)] * n_heads)
    out_specs = tuple(
        [pl.BlockSpec((None, k, tp), lambda n, t: (n, 0, t)) for k in ks]
        + [pl.BlockSpec((None, None, 1, 128),
                        lambda n, t: (n, t, 0, 0))] * n_heads)

    outs = pl.pallas_call(
        _make_kernel(n_heads, offs, hids, chunk, n_chunks,
                     unroll=(n_chunks <= 8)),
        out_shape=out_shape,
        grid_spec=pltpu.PrefetchScalarGridSpec(
            num_scalar_prefetch=0,
            grid=(N, num_tiles),
            in_specs=in_specs,
            out_specs=out_specs,
        ),
        compiler_params=pltpu.CompilerParams(
            # every grid cell writes disjoint blocks -> both axes can shard
            # across TensorCores (v7x megacore); safe on v5e/v6e too.
            dimension_semantics=("parallel", "parallel"),
            vmem_limit_bytes=vmem_limit),
    )(x, *gts, w1p, b1p, *w2b)

    logits = [outs[i].reshape(N, ks[i], H, W) for i in range(n_heads)]
    losses = []
    for i in range(n_heads):
        part = outs[n_heads + i]                        # (N, num_tiles, 1, 128)
        loss_sum = jnp.sum(part[..., 0, 0])
        valid_cnt = jnp.sum(part[..., 0, 1])
        losses.append(loss_sum / jnp.maximum(valid_cnt, 1.0))
    return logits, losses


# ----------------------------------------------------------------------------
# StandardPersformerHeads equivalent (forward pass only)
# ----------------------------------------------------------------------------
class StandardPersformerHeadsPallas:
    def __init__(self, key, in_channels, hidden,
                 num_bins_gravity, num_bins_latitude,
                 gravity_on=True, latitude_on=True,
                 compute_dtype=jnp.bfloat16, logits_dtype=jnp.bfloat16):
        self.gravity_on = gravity_on
        self.latitude_on = latitude_on
        # bf16 compute / bf16 prediction writeback by default (mem-bound win);
        # pass float32 for either if exact f32 numerics are required.
        self.compute_dtype = compute_dtype
        self.logits_dtype = logits_dtype

        def init_head(k, cin, ch, kout):
            k1, k2 = jax.random.split(k)
            return {
                # stored pre-transposed for channel-major compute
                "w1t": (jax.random.normal(k1, (ch, cin), jnp.float32)
                        * (1.0 / jnp.sqrt(cin))),
                "b1": jnp.zeros((ch, 1), jnp.float32),
                "w2t": (jax.random.normal(k2, (kout, ch), jnp.float32)
                        * (1.0 / jnp.sqrt(ch))),
                "b2": jnp.zeros((kout, 1), jnp.float32),
            }

        kg, kl = jax.random.split(key)
        if self.gravity_on:
            self.gravity_params = init_head(kg, in_channels, hidden,
                                            num_bins_gravity)
        if self.latitude_on:
            self.latitude_params = init_head(kl, in_channels, hidden,
                                             num_bins_latitude)

    def forward(self, features, targets):
        """features: (N, C, H, W) NCHW float.
        targets: dict with 'gt_gravity' / 'gt_latitude' of shape (N, H, W) int
        (per-pixel bin indices; out-of-range values are ignored in the loss).
        Returns (losses, prediction); prediction['pred_*'] is (N, num_bins, H, W)."""
        names, gt_list, param_list = [], [], []
        if self.gravity_on:
            names.append("gravity")
            gt_list.append(targets["gt_gravity"])
            param_list.append(self.gravity_params)
        if self.latitude_on:
            names.append("latitude")
            gt_list.append(targets["gt_latitude"])
            param_list.append(self.latitude_params)

        losses, prediction = {}, {}
        if not names:
            return losses, prediction

        logits_list, loss_list = _run_heads(features, gt_list, param_list,
                                            self.compute_dtype,
                                            self.logits_dtype)
        for i, name in enumerate(names):
            prediction[f"pred_{name}"] = logits_list[i]
            losses[f"{name}-ce-loss"] = loss_list[i]
        return losses, prediction


if __name__ == "__main__":
    key = jax.random.PRNGKey(0)
    k_feat, k_gg, k_gl, k_params = jax.random.split(key, 4)

    # small shapes: batch=2, channels=4, spatial=16x16, hidden=32, 8 bins/head
    N, C, H, W = 2, 4, 16, 16
    HIDDEN = 32
    K_GRAV, K_LAT = 8, 8

    features = jax.random.normal(k_feat, (N, C, H, W), jnp.float32)
    targets = {
        "gt_gravity": jax.random.randint(k_gg, (N, H, W), 0, K_GRAV,
                                         dtype=jnp.int32),
        "gt_latitude": jax.random.randint(k_gl, (N, H, W), 0, K_LAT,
                                          dtype=jnp.int32),
    }

    heads = StandardPersformerHeadsPallas(
        k_params, in_channels=C, hidden=HIDDEN,
        num_bins_gravity=K_GRAV, num_bins_latitude=K_LAT,
        gravity_on=True, latitude_on=True)

    losses, prediction = heads.forward(features, targets)
    jax.block_until_ready((losses, prediction))

    assert prediction["pred_gravity"].shape == (N, K_GRAV, H, W)
    assert prediction["pred_latitude"].shape == (N, K_LAT, H, W)
    assert jnp.isfinite(losses["gravity-ce-loss"])
    assert jnp.isfinite(losses["latitude-ce-loss"])

    print("KERNEL_OK")
</pallas_src>

<mosaic_0001>
module attributes {stable_mosaic.version = 11 : i64} {
  func.func @kernel(%arg0: i32, %arg1: i32, %arg2: memref<1x4x256xbf16, #tpu.memory_space<vmem>>, %arg3: memref<1x1x256xi32, #tpu.memory_space<vmem>>, %arg4: memref<1x1x256xi32, #tpu.memory_space<vmem>>, %arg5: memref<64x4xbf16, #tpu.memory_space<vmem>>, %arg6: memref<64x1xf32, #tpu.memory_space<vmem>>, %arg7: memref<8x32xbf16, #tpu.memory_space<vmem>>, %arg8: memref<8x1xf32, #tpu.memory_space<vmem>>, %arg9: memref<8x32xbf16, #tpu.memory_space<vmem>>, %arg10: memref<8x1xf32, #tpu.memory_space<vmem>>, %arg11: memref<1x8x256xbf16, #tpu.memory_space<vmem>>, %arg12: memref<1x8x256xbf16, #tpu.memory_space<vmem>>, %arg13: memref<1x1x1x128xf32, #tpu.memory_space<vmem>>, %arg14: memref<1x1x1x128xf32, #tpu.memory_space<vmem>>) attributes {dimension_semantics = [#tpu.dimension_semantics<parallel>, #tpu.dimension_semantics<parallel>], iteration_bounds = array<i64: 2, 1>, scalar_prefetch = 0 : i64, scratch_operands = 0 : i64, tpu.core_type = #tpu.core_type<tc>, window_params = [{transform_indices = @transform_0, window_bounds = array<i64: 1, 4, 256>}, {transform_indices = @transform_1, window_bounds = array<i64: 1, 1, 256>}, {transform_indices = @transform_2, window_bounds = array<i64: 1, 1, 256>}, {pipeline_mode = #tpu.pipeline_mode<synchronous>, transform_indices = @transform_3, window_bounds = array<i64: 64, 4>}, {pipeline_mode = #tpu.pipeline_mode<synchronous>, transform_indices = @transform_4, window_bounds = array<i64: 64, 1>}, {pipeline_mode = #tpu.pipeline_mode<synchronous>, transform_indices = @transform_5, window_bounds = array<i64: 8, 32>}, {pipeline_mode = #tpu.pipeline_mode<synchronous>, transform_indices = @transform_6, window_bounds = array<i64: 8, 1>}, {pipeline_mode = #tpu.pipeline_mode<synchronous>, transform_indices = @transform_7, window_bounds = array<i64: 8, 32>}, {pipeline_mode = #tpu.pipeline_mode<synchronous>, transform_indices = @transform_8, window_bounds = array<i64: 8, 1>}, {transform_indices = @transform_9, window_bounds = array<i64: 1, 8, 256>}, {transform_indices = @transform_10, window_bounds = array<i64: 1, 8, 256>}, {transform_indices = @transform_11, window_bounds = array<i64: 1, 1, 1, 128>}, {transform_indices = @transform_12, window_bounds = array<i64: 1, 1, 1, 128>}]} {
    %c0 = arith.constant 0 : index
    %c0_0 = arith.constant 0 : index
    %0 = vector.load %arg5[%c0, %c0_0] : memref<64x4xbf16, #tpu.memory_space<vmem>>, vector<64x4xbf16>
    %c0_1 = arith.constant 0 : index
    %c0_2 = arith.constant 0 : index
    %1 = vector.load %arg6[%c0_1, %c0_2] : memref<64x1xf32, #tpu.memory_space<vmem>>, vector<64x1xf32>
    %c0_3 = arith.constant 0 : index
    %c0_4 = arith.constant 0 : index
    %2 = vector.load %arg7[%c0_3, %c0_4] : memref<8x32xbf16, #tpu.memory_space<vmem>>, vector<8x32xbf16>
    %c0_5 = arith.constant 0 : index
    %c0_6 = arith.constant 0 : index
    %3 = vector.load %arg9[%c0_5, %c0_6] : memref<8x32xbf16, #tpu.memory_space<vmem>>, vector<8x32xbf16>
    %c0_7 = arith.constant 0 : index
    %c0_8 = arith.constant 0 : index
    %4 = vector.load %arg8[%c0_7, %c0_8] : memref<8x1xf32, #tpu.memory_space<vmem>>, vector<8x1xf32>
    %c0_9 = arith.constant 0 : index
    %c0_10 = arith.constant 0 : index
    %5 = vector.load %arg10[%c0_9, %c0_10] : memref<8x1xf32, #tpu.memory_space<vmem>>, vector<8x1xf32>
    %cst = arith.constant 0.000000e+00 : f32
    %cst_11 = arith.constant 0.000000e+00 : f32
    %cst_12 = arith.constant 0.000000e+00 : f32
    %cst_13 = arith.constant 0.000000e+00 : f32
    %c0_i32 = arith.constant 0 : i32
    %c256_i32 = arith.constant 256 : i32
    %6 = arith.muli %c0_i32, %c256_i32 : i32
    %7 = tpu.assume_multiple %6, 256 : i32
    %c0_14 = arith.constant 0 : index
    %c0_15 = arith.constant 0 : index
    %8 = arith.index_cast %7 : i32 to index
    %9 = vector.load %arg2[%c0_14, %c0_15, %8] : memref<1x4x256xbf16, #tpu.memory_space<vmem>>, vector<1x4x256xbf16>
    %10 = vector.shape_cast %9 : vector<1x4x256xbf16> to vector<4x256xbf16>
    %cst_16 = arith.constant dense<0.000000e+00> : vector<64x256xf32>
    %11 = tpu.matmul %0, %10, %cst_16 {dimension_numbers = #tpu.dot_dimension_numbers<[1], [0], [0], [1], [0, 0, 1, 1], [], []>} : vector<64x4xbf16>, vector<4x256xbf16>, vector<64x256xf32> -> vector<64x256xf32>
    %12 = vector.broadcast %1 : vector<64x1xf32> to vector<64x256xf32>
    %13 = arith.addf %11, %12 : vector<64x256xf32>
    %cst_17 = arith.constant 0.000000e+00 : f32
    %14 = vector.broadcast %cst_17 : f32 to vector<64x256xf32>
    %15 = arith.maximumf %13, %14 : vector<64x256xf32>
    %16 = vector.extract_strided_slice %15 {offsets = [0, 0], sizes = [32, 256], strides = [1, 1]} : vector<64x256xf32> to vector<32x256xf32>
    %17 = arith.truncf %16 : vector<32x256xf32> to vector<32x256xbf16>
    %cst_18 = arith.constant dense<0.000000e+00> : vector<8x256xf32>
    %18 = tpu.matmul %2, %17, %cst_18 {dimension_numbers = #tpu.dot_dimension_numbers<[1], [0], [0], [1], [0, 0, 1, 1], [], []>} : vector<8x32xbf16>, vector<32x256xbf16>, vector<8x256xf32> -> vector<8x256xf32>
    %19 = vector.broadcast %4 : vector<8x1xf32> to vector<8x256xf32>
    %20 = arith.addf %18, %19 : vector<8x256xf32>
    %21 = arith.truncf %20 : vector<8x256xf32> to vector<8x256xbf16>
    %c0_19 = arith.constant 0 : index
    %c0_20 = arith.constant 0 : index
    %22 = arith.index_cast %7 : i32 to index
    %23 = vector.load %arg11[%c0_19, %c0_20, %22] : memref<1x8x256xbf16, #tpu.memory_space<vmem>>, vector<1x8x256xbf16>
    %24 = vector.shape_cast %23 : vector<1x8x256xbf16> to vector<8x256xbf16>
    %25 = vector.shape_cast %21 : vector<8x256xbf16> to vector<1x8x256xbf16>
    tpu.vector_store %arg11[%c0_19, %c0_20, %22], %25 {strides = array<i32>} : memref<1x8x256xbf16, #tpu.memory_space<vmem>>, vector<1x8x256xbf16>,
    %c0_21 = arith.constant 0 : index
    %c0_22 = arith.constant 0 : index
    %26 = arith.index_cast %7 : i32 to index
    %27 = vector.load %arg3[%c0_21, %c0_22, %26] : memref<1x1x256xi32, #tpu.memory_space<vmem>>, vector<1x1x256xi32>
    %28 = vector.shape_cast %27 : vector<1x1x256xi32> to vector<1x256xi32>
    %cst_23 = arith.constant dense<0xFF800000> : vector<256xf32>
    %29 = vector.multi_reduction <maximumf>, %20, %cst_23 [0] : vector<8x256xf32> to vector<256xf32>
    %30 = vector.shape_cast %29 : vector<256xf32> to vector<1x256xf32>
    %31 = vector.broadcast %30 : vector<1x256xf32> to vector<8x256xf32>
    %32 = arith.subf %20, %31 : vector<8x256xf32>
    %33 = math.exp %32 : vector<8x256xf32>
    %cst_24 = arith.constant dense<0.000000e+00> : vector<256xf32>
    %34 = vector.multi_reduction <add>, %33, %cst_24 [0] : vector<8x256xf32> to vector<256xf32>
    %35 = vector.shape_cast %34 : vector<256xf32> to vector<1x256xf32>
    %36 = math.log %35 : vector<1x256xf32>
    %37 = arith.addf %36, %30 : vector<1x256xf32>
    %38 = tpu.iota {dimensions = array<i32: 0>} : vector<8x256xi32>
    %39 = vector.broadcast %28 : vector<1x256xi32> to vector<8x256xi32>
    %40 = arith.cmpi eq, %38, %39 : vector<8x256xi32>
    %41 = arith.extui %40 : vector<8x256xi1> to vector<8x256xi32>
    %42 = arith.sitofp %41 : vector<8x256xi32> to vector<8x256xf32>
    %43 = arith.mulf %20, %42 : vector<8x256xf32>
    %cst_25 = arith.constant dense<0.000000e+00> : vector<256xf32>
    %44 = vector.multi_reduction <add>, %43, %cst_25 [0] : vector<8x256xf32> to vector<256xf32>
    %45 = vector.shape_cast %44 : vector<256xf32> to vector<1x256xf32>
    %c0_i32_26 = arith.constant 0 : i32
    %46 = vector.broadcast %c0_i32_26 : i32 to vector<1x256xi32>
    %47 = arith.cmpi sge, %28, %46 : vector<1x256xi32>
    %c8_i32 = arith.constant 8 : i32
    %48 = vector.broadcast %c8_i32 : i32 to vector<1x256xi32>
    %49 = arith.cmpi slt, %28, %48 : vector<1x256xi32>
    %50 = arith.andi %47, %49 : vector<1x256xi1>
    %51 = arith.subf %37, %45 : vector<1x256xf32>
    %cst_27 = arith.constant 0.000000e+00 : f32
    %52 = vector.broadcast %cst_27 : f32 to vector<1x256xf32>
    %53 = arith.select %50, %51, %52 : vector<1x256xi1>, vector<1x256xf32>
    %54 = vector.shape_cast %53 : vector<1x256xf32> to vector<1x1x256xf32>
    %cst_28 = arith.constant dense<0.000000e+00> : vector<1xf32>
    %55 = vector.multi_reduction <add>, %54, %cst_28 [1, 2] : vector<1x1x256xf32> to vector<1xf32>
    %56 = vector.shape_cast %55 : vector<1xf32> to vector<1x1x1xf32>
    %57 = vector.extract %56[0, 0, 0] : f32 from vector<1x1x1xf32>
    %58 = arith.addf %cst, %57 : f32
    %59 = arith.extui %50 : vector<1x256xi1> to vector<1x256xi32>
    %60 = arith.sitofp %59 : vector<1x256xi32> to vector<1x256xf32>
    %61 = vector.shape_cast %60 : vector<1x256xf32> to vector<1x1x256xf32>
    %cst_29 = arith.constant dense<0.000000e+00> : vector<1xf32>
    %62 = vector.multi_reduction <add>, %61, %cst_29 [1, 2] : vector<1x1x256xf32> to vector<1xf32>
    %63 = vector.shape_cast %62 : vector<1xf32> to vector<1x1x1xf32>
    %64 = vector.extract %63[0, 0, 0] : f32 from vector<1x1x1xf32>
    %65 = arith.addf %cst_11, %64 : f32
    %66 = vector.extract_strided_slice %15 {offsets = [32, 0], sizes = [32, 256], strides = [1, 1]} : vector<64x256xf32> to vector<32x256xf32>
    %67 = arith.truncf %66 : vector<32x256xf32> to vector<32x256xbf16>
    %cst_30 = arith.constant dense<0.000000e+00> : vector<8x256xf32>
    %68 = tpu.matmul %3, %67, %cst_30 {dimension_numbers = #tpu.dot_dimension_numbers<[1], [0], [0], [1], [0, 0, 1, 1], [], []>} : vector<8x32xbf16>, vector<32x256xbf16>, vector<8x256xf32> -> vector<8x256xf32>
    %69 = vector.broadcast %5 : vector<8x1xf32> to vector<8x256xf32>
    %70 = arith.addf %68, %69 : vector<8x256xf32>
    %71 = arith.truncf %70 : vector<8x256xf32> to vector<8x256xbf16>
    %c0_31 = arith.constant 0 : index
    %c0_32 = arith.constant 0 : index
    %72 = arith.index_cast %7 : i32 to index
    %73 = vector.load %arg12[%c0_31, %c0_32, %72] : memref<1x8x256xbf16, #tpu.memory_space<vmem>>, vector<1x8x256xbf16>
    %74 = vector.shape_cast %73 : vector<1x8x256xbf16> to vector<8x256xbf16>
    %75 = vector.shape_cast %71 : vector<8x256xbf16> to vector<1x8x256xbf16>
    tpu.vector_store %arg12[%c0_31, %c0_32, %72], %75 {strides = array<i32>} : memref<1x8x256xbf16, #tpu.memory_space<vmem>>, vector<1x8x256xbf16>,
    %c0_33 = arith.constant 0 : index
    %c0_34 = arith.constant 0 : index
    %76 = arith.index_cast %7 : i32 to index
    %77 = vector.load %arg4[%c0_33, %c0_34, %76] : memref<1x1x256xi32, #tpu.memory_space<vmem>>, vector<1x1x256xi32>
    %78 = vector.shape_cast %77 : vector<1x1x256xi32> to vector<1x256xi32>
    %cst_35 = arith.constant dense<0xFF800000> : vector<256xf32>
    %79 = vector.multi_reduction <maximumf>, %70, %cst_35 [0] : vector<8x256xf32> to vector<256xf32>
    %80 = vector.shape_cast %79 : vector<256xf32> to vector<1x256xf32>
    %81 = vector.broadcast %80 : vector<1x256xf32> to vector<8x256xf32>
    %82 = arith.subf %70, %81 : vector<8x256xf32>
    %83 = math.exp %82 : vector<8x256xf32>
    %cst_36 = arith.constant dense<0.000000e+00> : vector<256xf32>
    %84 = vector.multi_reduction <add>, %83, %cst_36 [0] : vector<8x256xf32> to vector<256xf32>
    %85 = vector.shape_cast %84 : vector<256xf32> to vector<1x256xf32>
    %86 = math.log %85 : vector<1x256xf32>
    %87 = arith.addf %86, %80 : vector<1x256xf32>
    %88 = tpu.iota {dimensions = array<i32: 0>} : vector<8x256xi32>
    %89 = vector.broadcast %78 : vector<1x256xi32> to vector<8x256xi32>
    %90 = arith.cmpi eq, %88, %89 : vector<8x256xi32>
    %91 = arith.extui %90 : vector<8x256xi1> to vector<8x256xi32>
    %92 = arith.sitofp %91 : vector<8x256xi32> to vector<8x256xf32>
    %93 = arith.mulf %70, %92 : vector<8x256xf32>
    %cst_37 = arith.constant dense<0.000000e+00> : vector<256xf32>
    %94 = vector.multi_reduction <add>, %93, %cst_37 [0] : vector<8x256xf32> to vector<256xf32>
    %95 = vector.shape_cast %94 : vector<256xf32> to vector<1x256xf32>
    %c0_i32_38 = arith.constant 0 : i32
    %96 = vector.broadcast %c0_i32_38 : i32 to vector<1x256xi32>
    %97 = arith.cmpi sge, %78, %96 : vector<1x256xi32>
    %c8_i32_39 = arith.constant 8 : i32
    %98 = vector.broadcast %c8_i32_39 : i32 to vector<1x256xi32>
    %99 = arith.cmpi slt, %78, %98 : vector<1x256xi32>
    %100 = arith.andi %97, %99 : vector<1x256xi1>
    %101 = arith.subf %87, %95 : vector<1x256xf32>
    %cst_40 = arith.constant 0.000000e+00 : f32
    %102 = vector.broadcast %cst_40 : f32 to vector<1x256xf32>
    %103 = arith.select %100, %101, %102 : vector<1x256xi1>, vector<1x256xf32>
    %104 = vector.shape_cast %103 : vector<1x256xf32> to vector<1x1x256xf32>
    %cst_41 = arith.constant dense<0.000000e+00> : vector<1xf32>
    %105 = vector.multi_reduction <add>, %104, %cst_41 [1, 2] : vector<1x1x256xf32> to vector<1xf32>
    %106 = vector.shape_cast %105 : vector<1xf32> to vector<1x1x1xf32>
    %107 = vector.extract %106[0, 0, 0] : f32 from vector<1x1x1xf32>
    %108 = arith.addf %cst_12, %107 : f32
    %109 = arith.extui %100 : vector<1x256xi1> to vector<1x256xi32>
    %110 = arith.sitofp %109 : vector<1x256xi32> to vector<1x256xf32>
    %111 = vector.shape_cast %110 : vector<1x256xf32> to vector<1x1x256xf32>
    %cst_42 = arith.constant dense<0.000000e+00> : vector<1xf32>
    %112 = vector.multi_reduction <add>, %111, %cst_42 [1, 2] : vector<1x1x256xf32> to vector<1xf32>
    %113 = vector.shape_cast %112 : vector<1xf32> to vector<1x1x1xf32>
    %114 = vector.extract %113[0, 0, 0] : f32 from vector<1x1x1xf32>
    %115 = arith.addf %cst_13, %114 : f32
    %c1_i32 = arith.constant 1 : i32
    %116 = tpu.iota {dimensions = array<i32: 1>} : vector<1x128xi32>
    %c0_i32_43 = arith.constant 0 : i32
    %117 = vector.broadcast %c0_i32_43 : i32 to vector<1x128xi32>
    %118 = arith.cmpi eq, %116, %117 : vector<1x128xi32>
    %c1_i32_44 = arith.constant 1 : i32
    %119 = vector.broadcast %c1_i32_44 : i32 to vector<1x128xi32>
    %120 = arith.cmpi eq, %116, %119 : vector<1x128xi32>
    %cst_45 = arith.constant 0.000000e+00 : f32
    %121 = vector.broadcast %65 : f32 to vector<1x128xf32>
    %122 = vector.broadcast %cst_45 : f32 to vector<1x128xf32>
    %123 = arith.select %120, %121, %122 : vector<1x128xi1>, vector<1x128xf32>
    %124 = vector.broadcast %58 : f32 to vector<1x128xf32>
    %125 = arith.select %118, %124, %123 : vector<1x128xi1>, vector<1x128xf32>
    %c0_46 = arith.constant 0 : index
    %c0_47 = arith.constant 0 : index
    %c0_48 = arith.constant 0 : index
    %c0_49 = arith.constant 0 : index
    %126 = vector.load %arg13[%c0_46, %c0_47, %c0_48, %c0_49] : memref<1x1x1x128xf32, #tpu.memory_space<vmem>>, vector<1x1x1x128xf32>
    %127 = vector.shape_cast %126 : vector<1x1x1x128xf32> to vector<1x128xf32>
    %128 = vector.shape_cast %125 : vector<1x128xf32> to vector<1x1x1x128xf32>
    tpu.vector_store %arg13[%c0_46, %c0_47, %c0_48, %c0_49], %128 {strides = array<i32>} : memref<1x1x1x128xf32, #tpu.memory_space<vmem>>, vector<1x1x1x128xf32>,
    %c0_i32_50 = arith.constant 0 : i32
    %129 = vector.broadcast %c0_i32_50 : i32 to vector<1x128xi32>
    %130 = arith.cmpi eq, %116, %129 : vector<1x128xi32>
    %c1_i32_51 = arith.constant 1 : i32
    %131 = vector.broadcast %c1_i32_51 : i32 to vector<1x128xi32>
    %132 = arith.cmpi eq, %116, %131 : vector<1x128xi32>
    %cst_52 = arith.constant 0.000000e+00 : f32
    %133 = vector.broadcast %115 : f32 to vector<1x128xf32>
    %134 = vector.broadcast %cst_52 : f32 to vector<1x128xf32>
    %135 = arith.select %132, %133, %134 : vector<1x128xi1>, vector<1x128xf32>
    %136 = vector.broadcast %108 : f32 to vector<1x128xf32>
    %137 = arith.select %130, %136, %135 : vector<1x128xi1>, vector<1x128xf32>
    %c0_53 = arith.constant 0 : index
    %c0_54 = arith.constant 0 : index
    %c0_55 = arith.constant 0 : index
    %c0_56 = arith.constant 0 : index
    %138 = vector.load %arg14[%c0_53, %c0_54, %c0_55, %c0_56] : memref<1x1x1x128xf32, #tpu.memory_space<vmem>>, vector<1x1x1x128xf32>
    %139 = vector.shape_cast %138 : vector<1x1x1x128xf32> to vector<1x128xf32>
    %140 = vector.shape_cast %137 : vector<1x128xf32> to vector<1x1x1x128xf32>
    tpu.vector_store %arg14[%c0_53, %c0_54, %c0_55, %c0_56], %140 {strides = array<i32>} : memref<1x1x1x128xf32, #tpu.memory_space<vmem>>, vector<1x1x1x128xf32>,
    return
  }
  func.func @transform_0(%arg0: i32, %arg1: i32) -> (i32, i32, i32) {
    %c0_i32 = arith.constant 0 : i32
    %c0_i32_0 = arith.constant 0 : i32
    return %arg0, %c0_i32, %arg1 : i32, i32, i32
  }
  func.func @transform_1(%arg0: i32, %arg1: i32) -> (i32, i32, i32) {
    %c0_i32 = arith.constant 0 : i32
    %c0_i32_0 = arith.constant 0 : i32
    return %arg0, %c0_i32, %arg1 : i32, i32, i32
  }
  func.func @transform_2(%arg0: i32, %arg1: i32) -> (i32, i32, i32) {
    %c0_i32 = arith.constant 0 : i32
    %c0_i32_0 = arith.constant 0 : i32
    return %arg0, %c0_i32, %arg1 : i32, i32, i32
  }
  func.func @transform_3(%arg0: i32, %arg1: i32) -> (i32, i32) {
    %c0_i32 = arith.constant 0 : i32
    %c0_i32_0 = arith.constant 0 : i32
    %c0_i32_1 = arith.constant 0 : i32
    return %c0_i32, %c0_i32_0 : i32, i32
  }
  func.func @transform_4(%arg0: i32, %arg1: i32) -> (i32, i32) {
    %c0_i32 = arith.constant 0 : i32
    %c0_i32_0 = arith.constant 0 : i32
    %c0_i32_1 = arith.constant 0 : i32
    return %c0_i32, %c0_i32_0 : i32, i32
  }
  func.func @transform_5(%arg0: i32, %arg1: i32) -> (i32, i32) {
    %c0_i32 = arith.constant 0 : i32
    %c0_i32_0 = arith.constant 0 : i32
    %c0_i32_1 = arith.constant 0 : i32
    return %c0_i32, %c0_i32_0 : i32, i32
  }
  func.func @transform_6(%arg0: i32, %arg1: i32) -> (i32, i32) {
    %c0_i32 = arith.constant 0 : i32
    %c0_i32_0 = arith.constant 0 : i32
    %c0_i32_1 = arith.constant 0 : i32
    return %c0_i32, %c0_i32_0 : i32, i32
  }
  func.func @transform_7(%arg0: i32, %arg1: i32) -> (i32, i32) {
    %c0_i32 = arith.constant 0 : i32
    %c0_i32_0 = arith.constant 0 : i32
    %c0_i32_1 = arith.constant 0 : i32
    return %c0_i32, %c0_i32_0 : i32, i32
  }
  func.func @transform_8(%arg0: i32, %arg1: i32) -> (i32, i32) {
    %c0_i32 = arith.constant 0 : i32
    %c0_i32_0 = arith.constant 0 : i32
    %c0_i32_1 = arith.constant 0 : i32
    return %c0_i32, %c0_i32_0 : i32, i32
  }
  func.func @transform_9(%arg0: i32, %arg1: i32) -> (i32, i32, i32) {
    %c0_i32 = arith.constant 0 : i32
    %c0_i32_0 = arith.constant 0 : i32
    return %arg0, %c0_i32, %arg1 : i32, i32, i32
  }
  func.func @transform_10(%arg0: i32, %arg1: i32) -> (i32, i32, i32) {
    %c0_i32 = arith.constant 0 : i32
    %c0_i32_0 = arith.constant 0 : i32
    return %arg0, %c0_i32, %arg1 : i32, i32, i32
  }
  func.func @transform_11(%arg0: i32, %arg1: i32) -> (i32, i32, i32, i32) {
    %c0_i32 = arith.constant 0 : i32
    %c0_i32_0 = arith.constant 0 : i32
    %c0_i32_1 = arith.constant 0 : i32
    return %arg0, %arg1, %c0_i32, %c0_i32_0 : i32, i32, i32, i32
  }
  func.func @transform_12(%arg0: i32, %arg1: i32) -> (i32, i32, i32, i32) {
    %c0_i32 = arith.constant 0 : i32
    %c0_i32_0 = arith.constant 0 : i32
    %c0_i32_1 = arith.constant 0 : i32
    return %arg0, %arg1, %c0_i32, %c0_i32_0 : i32, i32, i32, i32
  }
}

</mosaic_0001>

<llo_original>
// kernel: tpu_custom_call.1
$region0: #{tpu_custom_call.1}
  #allocation0 [shape = 'u32[]', space=smem, size = 0x4, offset = 0x4, fixed_abs, tag = 'smem constant byte address 0x4 - core index']
  #allocation1 [shape = 'u32[72,128]{1,0:T(1,128)}', space=vmem, size = 0x9000, scoped, tag = 'internal scratch']
  %s0 = inlined_call_operand.vmem [shape: bf16[2,4,256], index: 0, kind: input, shape index: {}]
  %s1 = inlined_call_operand.vmem [shape: s32[2,1,256], index: 1, kind: input, shape index: {}]
  %s2 = inlined_call_operand.vmem [shape: s32[2,1,256], index: 2, kind: input, shape index: {}]
  %s3 = inlined_call_operand.vmem [shape: bf16[64,4], index: 3, kind: input, shape index: {}]
  %s4 = inlined_call_operand.vmem [shape: f32[64,1], index: 4, kind: input, shape index: {}]
  %s5 = inlined_call_operand.vmem [shape: bf16[8,32], index: 5, kind: input, shape index: {}]
  %s6 = inlined_call_operand.vmem [shape: f32[8,1], index: 6, kind: input, shape index: {}]
  %s7 = inlined_call_operand.vmem [shape: bf16[8,32], index: 7, kind: input, shape index: {}]
  %s8 = inlined_call_operand.vmem [shape: f32[8,1], index: 8, kind: input, shape index: {}]
  %s9 = inlined_call_operand.hbm [shape: bf16[2,8,256], index: 9, kind: output, shape index: {0}]
  %s10 = inlined_call_operand.hbm [shape: bf16[2,8,256], index: 10, kind: output, shape index: {1}]
  %s11 = inlined_call_operand.hbm [shape: f32[2,1,1,128], index: 11, kind: output, shape index: {2}]
  %s12 = inlined_call_operand.hbm [shape: f32[2,1,1,128], index: 12, kind: output, shape index: {3}]
  %13 = xla_tuple %s9, %s10, %s11, %s12
  %s14 = sld [smem:[#allocation0]]
  $region93: #{tpu_custom_call.1} parent=0
    _
  %s16 = ssub.s32 1, %s14
  %s17 = scalar_select 0, %s16, %s14
  $region1: #{tpu_custom_call.1} parent=0
    #allocation2 [shape = 'u8[8192]{0}', space=vmem, size = 0x2000, scoped, tag = 'output window, operand 0']
    #allocation3 [shape = 's32[2]{0}', space=sflag, size = 0x8, scoped, tag = 'scoped memory for tpu_custom_call.1']
    #allocation4 [shape = 'u8[8192]{0}', space=vmem, size = 0x2000, scoped, tag = 'output window, operand 1']
    #allocation5 [shape = 's32[2]{0}', space=sflag, size = 0x8, scoped, tag = 'scoped memory for tpu_custom_call.1']
    #allocation6 [shape = 'u8[1024]{0}', space=vmem, size = 0x400, scoped, tag = 'output window, operand 2']
    #allocation7 [shape = 'u8[1024]{0}', space=vmem, size = 0x400, scoped, tag = 'output window, operand 3']
    #allocation8 [shape = 's32[2]{0}', space=sflag, size = 0x8, scoped, tag = 'scoped memory for tpu_custom_call.1']
    %18 = vsyncpa [#allocation3], 0
    %s19 = scalar_lea.sflag [#allocation3], 1
    %20 = vsyncpa %s19, 0
    %21 = vsyncpa [#allocation5], 0
    %s22 = scalar_lea.sflag [#allocation5], 1
    %23 = vsyncpa %s22, 0
    %24 = vsyncpa [#allocation8], 0
    %s25 = scalar_lea.sflag [#allocation8], 1
    %26 = vsyncpa %s25, 0
    loop: start=0, step=1, limit=4
    $region2: #{tpu_custom_call.1} parent=1 // loop_pre_header
      _
    $region3: #{tpu_custom_call.1} parent=1 // loop_header
      %s28 = sphi 0, %s32
      %p29 = scmp.ge.s32.totalorder %s28, 4
      %s35 = sphi 0, %s47
      %s36 = sphi 0, %s43
      %s37 = sphi 0, %s35
      %s38 = sphi 0, %s36
      %s39 = sphi 0, %s37
      %s40 = sphi 0, %s38
      %s52 = sphi 0, %s54
      %s55 = sphi 0, %s52
      %s56 = sphi 0, %s55
      %s72 = sphi 0, %s56
      %s80 = sphi 0, %s82
      %s83 = sphi 0, %s80
      %s84 = sphi 0, %s83
      %s100 = sphi 0, %s84
      %s108 = sphi 0, %s110
      %s111 = sphi 0, %s108
      %s112 = sphi 0, %s111
      %s128 = sphi 0, %s112
      %s132 = sphi 0, %s132
      %s134 = sphi 0, %s132
      %s135 = sphi 0, %s134
      %s149 = sphi 0, %s135
      %s153 = sphi 0, %s153
      %s155 = sphi 0, %s153
      %s156 = sphi 0, %s155
      %s170 = sphi 0, %s156
      %s174 = sphi 0, %s174
      %s176 = sphi 0, %s174
      %s177 = sphi 0, %s176
      %s191 = sphi 0, %s177
      %s195 = sphi 0, %s195
      %s197 = sphi 0, %s195
      %s198 = sphi 0, %s197
      %s212 = sphi 0, %s198
      %s216 = sphi 0, %s216
      %s218 = sphi 0, %s216
      %s219 = sphi 0, %s218
      %s233 = sphi 0, %s219
      %s237 = sphi 0, %s237
      %s239 = sphi 0, %s237
      %s240 = sphi 0, %s239
      %s254 = sphi 0, %s240
      %s262 = sphi 0, %s264
      %s265 = sphi 0, %s262
      %s266 = sphi 0, %s265
      %s282 = sphi 0, %s266
      %s290 = sphi 0, %s292
      %s293 = sphi 0, %s290
      %s294 = sphi 0, %s293
      %s310 = sphi 0, %s294
      %s318 = sphi 0, %s320
      %s321 = sphi 0, %s318
      %s322 = sphi 0, %s321
      %s338 = sphi 0, %s322
      %s346 = sphi 0, %s348
      %s349 = sphi 0, %s346
      %s350 = sphi 0, %s349
      %s366 = sphi 0, %s350
    $region4: #{tpu_custom_call.1} parent=1 // loop_header_branch
      %31 = sbr.rel (%p29) target = $region8
    $region5: #{tpu_custom_call.1} parent=1 // loop_body
      %s33 = ssub.s32 %s28, 1
      %s34 = ssub.s32 %s28, 2
      %s41 = sadd.s32 1, %s36
      %p42 = scmp.ge.s32.totalorder %s41, 1
      %s43 = scalar_select %p42, 0, %s41
      %s44 = sadd.s32 1, %s35
      %s45 = scalar_select %p42, %s44, %s35
      %p46 = scmp.ge.s32.totalorder %s45, 2
      %s47 = scalar_select %p46, 0, %s45
      %s48 = ssub.s32 %s35, %s47
      %s49 = ssub.s32 %s36, %s43
      %s50 = sor.u32 %s48, %s49
      %p51 = scmp.eq.s32.totalorder %s50, 0
      %s53 = sadd.s32 %s52, 1
      %s54 = scalar_select %p51, %s52, %s53
      %p57 = pneg %p51
      %p58 = scmp.eq.s32.totalorder %s28, 1
      %p59 = por %p57, %p58
      %p60 = scmp.ne.s32.totalorder %s52, %s55
      %p61 = scmp.eq.s32.totalorder %s28, 0
      %p62 = por %p60, %p61
      %p63 = scmp.ne.s32.totalorder %s52, %s55
      %p64 = scmp.eq.s32.totalorder %s33, 1
      %p65 = por %p63, %p64
      %p66 = scmp.ne.s32.totalorder %s55, %s56
      %p67 = scmp.eq.s32.totalorder %s33, 0
      %p68 = por %p66, %p67
      %p69 = scmp.ne.s32.totalorder %s55, %s56
      %p70 = scmp.eq.s32.totalorder %s34, 1
      %p71 = por %p69, %p70
      %p73 = scmp.ne.s32.totalorder %s56, %s72
      %p74 = scmp.eq.s32.totalorder %s34, 0
      %p75 = por %p73, %p74
      %s76 = ssub.s32 %s35, %s47
      %s77 = ssub.s32 %s36, %s43
      %s78 = sor.u32 %s76, %s77
      %p79 = scmp.eq.s32.totalorder %s78, 0
      %s81 = sadd.s32 %s80, 1
      %s82 = scalar_select %p79, %s80, %s81
      %p85 = pneg %p79
      %p86 = scmp.eq.s32.totalorder %s28, 1
      %p87 = por %p85, %p86
      %p88 = scmp.ne.s32.totalorder %s80, %s83
      %p89 = scmp.eq.s32.totalorder %s28, 0
      %p90 = por %p88, %p89
      %p91 = scmp.ne.s32.totalorder %s80, %s83
      %p92 = scmp.eq.s32.totalorder %s33, 1
      %p93 = por %p91, %p92
      %p94 = scmp.ne.s32.totalorder %s83, %s84
      %p95 = scmp.eq.s32.totalorder %s33, 0
      %p96 = por %p94, %p95
      %p97 = scmp.ne.s32.totalorder %s83, %s84
      %p98 = scmp.eq.s32.totalorder %s34, 1
      %p99 = por %p97, %p98
      %p101 = scmp.ne.s32.totalorder %s84, %s100
      %p102 = scmp.eq.s32.totalorder %s34, 0
      %p103 = por %p101, %p102
      %s104 = ssub.s32 %s35, %s47
      %s105 = ssub.s32 %s36, %s43
      %s106 = sor.u32 %s104, %s105
      %p107 = scmp.eq.s32.totalorder %s106, 0
      %s109 = sadd.s32 %s108, 1
      %s110 = scalar_select %p107, %s108, %s109
      %p113 = pneg %p107
      %p114 = scmp.eq.s32.totalorder %s28, 1
      %p115 = por %p113, %p114
      %p116 = scmp.ne.s32.totalorder %s108, %s111
      %p117 = scmp.eq.s32.totalorder %s28, 0
      %p118 = por %p116, %p117
      %p119 = scmp.ne.s32.totalorder %s108, %s111
      %p120 = scmp.eq.s32.totalorder %s33, 1
      %p121 = por %p119, %p120
      %p122 = scmp.ne.s32.totalorder %s111, %s112
      %p123 = scmp.eq.s32.totalorder %s33, 0
      %p124 = por %p122, %p123
      %p125 = scmp.ne.s32.totalorder %s111, %s112
      %p126 = scmp.eq.s32.totalorder %s34, 1
      %p127 = por %p125, %p126
      %p129 = scmp.ne.s32.totalorder %s112, %s128
      %p130 = scmp.eq.s32.totalorder %s34, 0
      %p131 = por %p129, %p130
      %s133 = sadd.s32 %s132, 1
      %p136 = scmp.eq.s32.totalorder %s28, 1
      %p137 = scmp.ne.s32.totalorder %s132, %s134
      %p138 = scmp.eq.s32.totalorder %s28, 0
      %p139 = por %p137, %p138
      %p140 = scmp.ne.s32.totalorder %s132, %s134
      %p141 = scmp.eq.s32.totalorder %s33, 1
      %p142 = por %p140, %p141
      %p143 = scmp.ne.s32.totalorder %s134, %s135
      %p144 = scmp.eq.s32.totalorder %s33, 0
      %p145 = por %p143, %p144
      %p146 = scmp.ne.s32.totalorder %s134, %s135
      %p147 = scmp.eq.s32.totalorder %s34, 1
      %p148 = por %p146, %p147
      %p150 = scmp.ne.s32.totalorder %s135, %s149
      %p151 = scmp.eq.s32.totalorder %s34, 0
      %p152 = por %p150, %p151
      %s154 = sadd.s32 %s153, 1
      %p157 = scmp.eq.s32.totalorder %s28, 1
      %p158 = scmp.ne.s32.totalorder %s153, %s155
      %p159 = scmp.eq.s32.totalorder %s28, 0
      %p160 = por %p158, %p159
      %p161 = scmp.ne.s32.totalorder %s153, %s155
      %p162 = scmp.eq.s32.totalorder %s33, 1
      %p163 = por %p161, %p162
      %p164 = scmp.ne.s32.totalorder %s155, %s156
      %p165 = scmp.eq.s32.totalorder %s33, 0
      %p166 = por %p164, %p165
      %p167 = scmp.ne.s32.totalorder %s155, %s156
      %p168 = scmp.eq.s32.totalorder %s34, 1
      %p169 = por %p167, %p168
      %p171 = scmp.ne.s32.totalorder %s156, %s170
      %p172 = scmp.eq.s32.totalorder %s34, 0
      %p173 = por %p171, %p172
      %s175 = sadd.s32 %s174, 1
      %p178 = scmp.eq.s32.totalorder %s28, 1
      %p179 = scmp.ne.s32.totalorder %s174, %s176
      %p180 = scmp.eq.s32.totalorder %s28, 0
      %p181 = por %p179, %p180
      %p182 = scmp.ne.s32.totalorder %s174, %s176
      %p183 = scmp.eq.s32.totalorder %s33, 1
      %p184 = por %p182, %p183
      %p185 = scmp.ne.s32.totalorder %s176, %s177
      %p186 = scmp.eq.s32.totalorder %s33, 0
      %p187 = por %p185, %p186
      %p188 = scmp.ne.s32.totalorder %s176, %s177
      %p189 = scmp.eq.s32.totalorder %s34, 1
      %p190 = por %p188, %p189
      %p192 = scmp.ne.s32.totalorder %s177, %s191
      %p193 = scmp.eq.s32.totalorder %s34, 0
      %p194 = por %p192, %p193
      %s196 = sadd.s32 %s195, 1
      %p199 = scmp.eq.s32.totalorder %s28, 1
      %p200 = scmp.ne.s32.totalorder %s195, %s197
      %p201 = scmp.eq.s32.totalorder %s28, 0
      %p202 = por %p200, %p201
      %p203 = scmp.ne.s32.totalorder %s195, %s197
      %p204 = scmp.eq.s32.totalorder %s33, 1
      %p205 = por %p203, %p204
      %p206 = scmp.ne.s32.totalorder %s197, %s198
      %p207 = scmp.eq.s32.totalorder %s33, 0
      %p208 = por %p206, %p207
      %p209 = scmp.ne.s32.totalorder %s197, %s198
      %p210 = scmp.eq.s32.totalorder %s34, 1
      %p211 = por %p209, %p210
      %p213 = scmp.ne.s32.totalorder %s198, %s212
      %p214 = scmp.eq.s32.totalorder %s34, 0
      %p215 = por %p213, %p214
      %s217 = sadd.s32 %s216, 1
      %p220 = scmp.eq.s32.totalorder %s28, 1
      %p221 = scmp.ne.s32.totalorder %s216, %s218
      %p222 = scmp.eq.s32.totalorder %s28, 0
      %p223 = por %p221, %p222
      %p224 = scmp.ne.s32.totalorder %s216, %s218
      %p225 = scmp.eq.s32.totalorder %s33, 1
      %p226 = por %p224, %p225
      %p227 = scmp.ne.s32.totalorder %s218, %s219
      %p228 = scmp.eq.s32.totalorder %s33, 0
      %p229 = por %p227, %p228
      %p230 = scmp.ne.s32.totalorder %s218, %s219
      %p231 = scmp.eq.s32.totalorder %s34, 1
      %p232 = por %p230, %p231
      %p234 = scmp.ne.s32.totalorder %s219, %s233
      %p235 = scmp.eq.s32.totalorder %s34, 0
      %p236 = por %p234, %p235
      %s238 = sadd.s32 %s237, 1
      %p241 = scmp.eq.s32.totalorder %s28, 1
      %p242 = scmp.ne.s32.totalorder %s237, %s239
      %p243 = scmp.eq.s32.totalorder %s28, 0
      %p244 = por %p242, %p243
      %p245 = scmp.ne.s32.totalorder %s237, %s239
      %p246 = scmp.eq.s32.totalorder %s33, 1
      %p247 = por %p245, %p246
      %p248 = scmp.ne.s32.totalorder %s239, %s240
      %p249 = scmp.eq.s32.totalorder %s33, 0
      %p250 = por %p248, %p249
      %p251 = scmp.ne.s32.totalorder %s239, %s240
      %p252 = scmp.eq.s32.totalorder %s34, 1
      %p253 = por %p251, %p252
      %p255 = scmp.ne.s32.totalorder %s240, %s254
      %p256 = scmp.eq.s32.totalorder %s34, 0
      %p257 = por %p255, %p256
      %s258 = ssub.s32 %s35, %s47
      %s259 = ssub.s32 %s36, %s43
      %s260 = sor.u32 %s258, %s259
      %p261 = scmp.eq.s32.totalorder %s260, 0
      %s263 = sadd.s32 %s262, 1
      %s264 = scalar_select %p261, %s262, %s263
      %p267 = pneg %p261
      %p268 = scmp.eq.s32.totalorder %s28, 1
      %p269 = por %p267, %p268
      %p270 = scmp.ne.s32.totalorder %s262, %s265
      %p271 = scmp.eq.s32.totalorder %s28, 0
      %p272 = por %p270, %p271
      %p273 = scmp.ne.s32.totalorder %s262, %s265
      %p274 = scmp.eq.s32.totalorder %s33, 1
      %p275 = por %p273, %p274
      %p276 = scmp.ne.s32.totalorder %s265, %s266
      %p277 = scmp.eq.s32.totalorder %s33, 0
      %p278 = por %p276, %p277
      %p279 = scmp.ne.s32.totalorder %s265, %s266
      %p280 = scmp.eq.s32.totalorder %s34, 1
      %p281 = por %p279, %p280
      %p283 = scmp.ne.s32.totalorder %s266, %s282
      %p284 = scmp.eq.s32.totalorder %s34, 0
      %p285 = por %p283, %p284
      %s286 = ssub.s32 %s35, %s47
      %s287 = ssub.s32 %s36, %s43
      %s288 = sor.u32 %s286, %s287
      %p289 = scmp.eq.s32.totalorder %s288, 0
      %s291 = sadd.s32 %s290, 1
      %s292 = scalar_select %p289, %s290, %s291
      %p295 = pneg %p289
      %p296 = scmp.eq.s32.totalorder %s28, 1
      %p297 = por %p295, %p296
      %p298 = scmp.ne.s32.totalorder %s290, %s293
      %p299 = scmp.eq.s32.totalorder %s28, 0
      %p300 = por %p298, %p299
      %p301 = scmp.ne.s32.totalorder %s290, %s293
      %p302 = scmp.eq.s32.totalorder %s33, 1
      %p303 = por %p301, %p302
      %p304 = scmp.ne.s32.totalorder %s293, %s294
      %p305 = scmp.eq.s32.totalorder %s33, 0
      %p306 = por %p304, %p305
      %p307 = scmp.ne.s32.totalorder %s293, %s294
      %p308 = scmp.eq.s32.totalorder %s34, 1
      %p309 = por %p307, %p308
      %p311 = scmp.ne.s32.totalorder %s294, %s310
      %p312 = scmp.eq.s32.totalorder %s34, 0
      %p313 = por %p311, %p312
      %s314 = ssub.s32 %s35, %s47
      %s315 = ssub.s32 %s36, %s43
      %s316 = sor.u32 %s314, %s315
      %p317 = scmp.eq.s32.totalorder %s316, 0
      %s319 = sadd.s32 %s318, 1
      %s320 = scalar_select %p317, %s318, %s319
      %p323 = pneg %p317
      %p324 = scmp.eq.s32.totalorder %s28, 1
      %p325 = por %p323, %p324
      %p326 = scmp.ne.s32.totalorder %s318, %s321
      %p327 = scmp.eq.s32.totalorder %s28, 0
      %p328 = por %p326, %p327
      %p329 = scmp.ne.s32.totalorder %s318, %s321
      %p330 = scmp.eq.s32.totalorder %s33, 1
      %p331 = por %p329, %p330
      %p332 = scmp.ne.s32.totalorder %s321, %s322
      %p333 = scmp.eq.s32.totalorder %s33, 0
      %p334 = por %p332, %p333
      %p335 = scmp.ne.s32.totalorder %s321, %s322
      %p336 = scmp.eq.s32.totalorder %s34, 1
      %p337 = por %p335, %p336
      %p339 = scmp.ne.s32.totalorder %s322, %s338
      %p340 = scmp.eq.s32.totalorder %s34, 0
      %p341 = por %p339, %p340
      %s342 = ssub.s32 %s35, %s47
      %s343 = ssub.s32 %s36, %s43
      %s344 = sor.u32 %s342, %s343
      %p345 = scmp.eq.s32.totalorder %s344, 0
      %s347 = sadd.s32 %s346, 1
      %s348 = scalar_select %p345, %s346, %s347
      %p351 = pneg %p345
      %p352 = scmp.eq.s32.totalorder %s28, 1
      %p353 = por %p351, %p352
      %p354 = scmp.ne.s32.totalorder %s346, %s349
      %p355 = scmp.eq.s32.totalorder %s28, 0
      %p356 = por %p354, %p355
      %p357 = scmp.ne.s32.totalorder %s346, %s349
      %p358 = scmp.eq.s32.totalorder %s33, 1
      %p359 = por %p357, %p358
      %p360 = scmp.ne.s32.totalorder %s349, %s350
      %p361 = scmp.eq.s32.totalorder %s33, 0
      %p362 = por %p360, %p361
      %p363 = scmp.ne.s32.totalorder %s349, %s350
      %p364 = scmp.eq.s32.totalorder %s34, 1
      %p365 = por %p363, %p364
      %p367 = scmp.ne.s32.totalorder %s350, %s366
      %p368 = scmp.eq.s32.totalorder %s34, 0
      %p369 = por %p367, %p368
      %p370 = scmp.le.s32.totalorder 1, %s28
      %p371 = scmp.lt.s32.totalorder %s28, 3
      %p372 = pnand %p370, %p371
      %p373 = pneg %p372
      // Predicated region
      $region9: #{tpu_custom_call.1} parent=5 // pred_check
        _
      $region10: #{tpu_custom_call.1} parent=5 // pred_check_branch
        %375 = sbr.rel (%p372) target = $region12
      $region11: #{tpu_custom_call.1} parent=5 // pred_region
        %s376 = ssub.s32 %s28, 1
        // Predicated region
        $region13: #{tpu_custom_call.1} parent=11 // pred_check
          %p377 = pneg %p145
        $region14: #{tpu_custom_call.1} parent=11 // pred_check_branch
          %379 = sbr.rel (%p377) target = $region16
        $region15: #{tpu_custom_call.1} parent=11 // pred_region
          _
        $region16: #{tpu_custom_call.1} parent=11 // pred_fallthru
          _
        // Predicated region
        $region17: #{tpu_custom_call.1} parent=11 // pred_check
          %p380 = pneg %p166
        $region18: #{tpu_custom_call.1} parent=11 // pred_check_branch
          %382 = sbr.rel (%p380) target = $region20
        $region19: #{tpu_custom_call.1} parent=11 // pred_region
          _
        $region20: #{tpu_custom_call.1} parent=11 // pred_fallthru
          _
        // Predicated region
        $region21: #{tpu_custom_call.1} parent=11 // pred_check
          %p383 = pneg %p187
        $region22: #{tpu_custom_call.1} parent=11 // pred_check_branch
          %385 = sbr.rel (%p383) target = $region24
        $region23: #{tpu_custom_call.1} parent=11 // pred_region
          _
        $region24: #{tpu_custom_call.1} parent=11 // pred_fallthru
          _
        // Predicated region
        $region25: #{tpu_custom_call.1} parent=11 // pred_check
          %p386 = pneg %p208
        $region26: #{tpu_custom_call.1} parent=11 // pred_check_branch
          %388 = sbr.rel (%p386) target = $region28
        $region27: #{tpu_custom_call.1} parent=11 // pred_region
          _
        $region28: #{tpu_custom_call.1} parent=11 // pred_fallthru
          _
        // Predicated region
        $region29: #{tpu_custom_call.1} parent=11 // pred_check
          %p389 = pneg %p229
        $region30: #{tpu_custom_call.1} parent=11 // pred_check_branch
          %391 = sbr.rel (%p389) target = $region32
        $region31: #{tpu_custom_call.1} parent=11 // pred_region
          _
        $region32: #{tpu_custom_call.1} parent=11 // pred_fallthru
          _
        // Predicated region
        $region33: #{tpu_custom_call.1} parent=11 // pred_check
          %p392 = pneg %p250
        $region34: #{tpu_custom_call.1} parent=11 // pred_check_branch
          %394 = sbr.rel (%p392) target = $region36
        $region35: #{tpu_custom_call.1} parent=11 // pred_region
          _
        $region36: #{tpu_custom_call.1} parent=11 // pred_fallthru
          _
      $region12: #{tpu_custom_call.1} parent=5 // pred_fallthru
        _
      %p395 = scmp.lt.s32.totalorder %s28, 2
      // Predicated region
      $region37: #{tpu_custom_call.1} parent=5 // pred_check
        %p396 = pneg %p395
      $region38: #{tpu_custom_call.1} parent=5 // pred_check_branch
        %398 = sbr.rel (%p396) target = $region40
      $region39: #{tpu_custom_call.1} parent=5 // pred_region
        // Predicated region
        $region41: #{tpu_custom_call.1} parent=39 // pred_check
          %p399 = pneg %p62
        $region42: #{tpu_custom_call.1} parent=39 // pred_check_branch
          %401 = sbr.rel (%p399) target = $region44
        $region43: #{tpu_custom_call.1} parent=39 // pred_region
          %s402 = smul.u32 2, %s36
          %p403 = scmp.lt.s32.totalorder %s35, 1
          %s404 = scalar_select %p403, %s35, 1
          %p405 = scmp.lt.s32.totalorder %s402, 1
          %s406 = scalar_select %p405, %s402, 1
          %s407 = smul.addr %s404, 2
          %s408 = sadd.s32 %s406, %s407
          %s409 = smul.addr %s408, 2
          %s410 = scalar_lea.vmem %s0, %s409
          %s411 = smul.u32 2, %s36
        $region44: #{tpu_custom_call.1} parent=39 // pred_fallthru
          _
        // Predicated region
        $region45: #{tpu_custom_call.1} parent=39 // pred_check
          %p412 = pneg %p90
        $region46: #{tpu_custom_call.1} parent=39 // pred_check_branch
          %414 = sbr.rel (%p412) target = $region48
        $region47: #{tpu_custom_call.1} parent=39 // pred_region
          %s415 = smul.u32 2, %s36
          %p416 = scmp.lt.s32.totalorder %s35, 1
          %s417 = scalar_select %p416, %s35, 1
          %p418 = scmp.lt.s32.totalorder %s415, 1
          %s419 = scalar_select %p418, %s415, 1
          %s420 = smul.addr %s417, 2
          %s421 = sadd.s32 %s419, %s420
          %s422 = scalar_lea.vmem %s1, %s421
          %s423 = smul.u32 2, %s36
        $region48: #{tpu_custom_call.1} parent=39 // pred_fallthru
          _
        // Predicated region
        $region49: #{tpu_custom_call.1} parent=39 // pred_check
          %p424 = pneg %p118
        $region50: #{tpu_custom_call.1} parent=39 // pred_check_branch
          %426 = sbr.rel (%p424) target = $region52
        $region51: #{tpu_custom_call.1} parent=39 // pred_region
          %s427 = smul.u32 2, %s36
          %p428 = scmp.lt.s32.totalorder %s35, 1
          %s429 = scalar_select %p428, %s35, 1
          %p430 = scmp.lt.s32.totalorder %s427, 1
          %s431 = scalar_select %p430, %s427, 1
          %s432 = smul.addr %s429, 2
          %s433 = sadd.s32 %s431, %s432
          %s434 = scalar_lea.vmem %s2, %s433
          %s435 = smul.u32 2, %s36
        $region52: #{tpu_custom_call.1} parent=39 // pred_fallthru
          _
      $region40: #{tpu_custom_call.1} parent=5 // pred_fallthru
        _
      %p436 = scmp.le.s32.totalorder 1, %s28
      %p437 = scmp.lt.s32.totalorder %s28, 3
      %p438 = pnand %p436, %p437
      %p439 = pneg %p438
      // Predicated region
      $region53: #{tpu_custom_call.1} parent=5 // pred_check
        _
      $region54: #{tpu_custom_call.1} parent=5 // pred_check_branch
        %441 = sbr.rel (%p438) target = $region56
      $region55: #{tpu_custom_call.1} parent=5 // pred_region
        %s442 = ssub.s32 %s28, 1
        %s443 = smul.u32 2, %s38
        %p444 = scmp.lt.s32.totalorder %s37, 1
        %s445 = scalar_select %p444, %s37, 1
        %p446 = scmp.lt.s32.totalorder %s443, 1
        %s447 = scalar_select %p446, %s443, 1
        %s448 = smul.addr %s445, 2
        %s449 = sadd.s32 %s447, %s448
        %s450 = smul.addr %s449, 2
        %s451 = scalar_lea.vmem %s0, %s450
        %p452 = pneg %p68
        %p453 = pneg %p65
        %s454 = smul.u32 2, %s38
        %p455 = scmp.lt.s32.totalorder %s37, 1
        %s456 = scalar_select %p455, %s37, 1
        %p457 = scmp.lt.s32.totalorder %s454, 1
        %s458 = scalar_select %p457, %s454, 1
        %s459 = smul.addr %s456, 2
        %s460 = sadd.s32 %s458, %s459
        %s461 = scalar_lea.vmem %s1, %s460
        %p462 = pneg %p96
        %p463 = pneg %p93
        %s464 = smul.u32 2, %s38
        %p465 = scmp.lt.s32.totalorder %s37, 1
        %s466 = scalar_select %p465, %s37, 1
        %p467 = scmp.lt.s32.totalorder %s464, 1
        %s468 = scalar_select %p467, %s464, 1
        %s469 = smul.addr %s466, 2
        %s470 = sadd.s32 %s468, %s469
        %s471 = scalar_lea.vmem %s2, %s470
        %p472 = pneg %p124
        %p473 = pneg %p121
        %p474 = pneg %p145
        %p475 = pneg %p142
        %p476 = pneg %p166
        %p477 = pneg %p163
        %p478 = pneg %p187
        %p479 = pneg %p184
        %p480 = pneg %p208
        %p481 = pneg %p205
        %p482 = pneg %p229
        %p483 = pneg %p226
        %p484 = pneg %p250
        %p485 = pneg %p247
        %p486 = pneg %p278
        %p487 = pneg %p275
        %s488 = sand.u32 %s265, 1
        %s489 = scalar_lea.sflag [#allocation3], %s488
        %s490 = sand.u32 %s265, 1
        %s491 = smul.addr %s490, 8
        %s492 = scalar_lea.vmem [#allocation2], %s491
        %p493 = pneg %p306
        %p494 = pneg %p303
        %s495 = sand.u32 %s33, 1
        %s496 = scalar_lea.sflag [#allocation5], %s495
        %s497 = sand.u32 %s293, 1
        %s498 = smul.addr %s497, 8
        %s499 = scalar_lea.vmem [#allocation4], %s498
        %p500 = pneg %p334
        %p501 = pneg %p331
        %s502 = sand.u32 %s33, 1
        %s503 = scalar_lea.sflag [#allocation5], %s502
        %s504 = sand.u32 %s321, 1
        %s505 = scalar_lea.vmem [#allocation6], %s504
        %p506 = pneg %p362
        %p507 = pneg %p359
        %s508 = sand.u32 %s349, 1
        %s509 = scalar_lea.sflag [#allocation8], %s508
        %s510 = sand.u32 %s349, 1
        %s511 = scalar_lea.vmem [#allocation7], %s510
        %s512 = smul.u32 2, %s38
        %p513 = scmp.lt.s32.totalorder %s37, 1
        %s514 = scalar_select %p513, %s37, 1
        %p515 = scmp.lt.s32.totalorder %s512, 1
        %s516 = scalar_select %p515, %s512, 1
        %s517 = smul.addr %s514, 2
        %s518 = sadd.s32 %s516, %s517
        %s519 = smul.addr %s518, 2
        %s520 = scalar_lea.vmem %s0, %s519
        %s521 = smul.u32 2, %s38
        %s522 = smul.u32 2, %s38
        %p523 = scmp.lt.s32.totalorder %s37, 1
        %s524 = scalar_select %p523, %s37, 1
        %p525 = scmp.lt.s32.totalorder %s522, 1
        %s526 = scalar_select %p525, %s522, 1
        %s527 = smul.addr %s524, 2
        %s528 = sadd.s32 %s526, %s527
        %s529 = scalar_lea.vmem %s1, %s528
        %s530 = smul.u32 2, %s38
        %s531 = smul.u32 2, %s38
        %p532 = scmp.lt.s32.totalorder %s37, 1
        %s533 = scalar_select %p532, %s37, 1
        %p534 = scmp.lt.s32.totalorder %s531, 1
        %s535 = scalar_select %p534, %s531, 1
        %s536 = smul.addr %s533, 2
        %s537 = sadd.s32 %s535, %s536
        %s538 = scalar_lea.vmem %s2, %s537
        %s539 = smul.u32 2, %s38
        %s540 = smul.u32 2, %s38
        %s541 = smul.u32 2, %s38
        %v543 = vld [vmem:[%s3] sm:$0xf]
        %v544 = vld [vmem:[%s3 + $0x4] sm:$0xf]
        %v545 = vld [vmem:[%s3 + $0x8] sm:$0xf]
        %v546 = vld [vmem:[%s3 + $0xc] sm:$0xf]
        %v547 = vld [vmem:[%s3 + $0x10] sm:$0xf]
        %v548 = vld [vmem:[%s3 + $0x14] sm:$0xf]
        %v549 = vld [vmem:[%s3 + $0x18] sm:$0xf]
        %v550 = vld [vmem:[%s3 + $0x1c] sm:$0xf]
        %v551 = vld [vmem:[%s4] sm:$0xff]
        %v552 = vld [vmem:[%s4 + $0x8] sm:$0xff]
        %v553 = vld [vmem:[%s4 + $0x10] sm:$0xff]
        %v554 = vld [vmem:[%s4 + $0x18] sm:$0xff]
        %v555 = vld [vmem:[%s4 + $0x20] sm:$0xff]
        %v556 = vld [vmem:[%s4 + $0x28] sm:$0xff]
        %v557 = vld [vmem:[%s4 + $0x30] sm:$0xff]
        %v558 = vld [vmem:[%s4 + $0x38] sm:$0xff]
        %v559 = vld [vmem:[%s5] sm:$0xf]
        %v560 = vld [vmem:[%s7] sm:$0xf]
        %v561 = vld [vmem:[%s6] sm:$0xff]
        %v562 = vld [vmem:[%s8] sm:$0xff]
        %v563 = vld [vmem:[%s520] sm:$0xf]
        %565 = vset.pattern.permute.xlu0 0
        %566 = vperm.xlu0 %565, %v551
        %v567 = vpop.permute.xlu0 %566
        %570 = vset.pattern.permute.xlu0 0
        %571 = vperm.xlu0 %570, %v552
        %v572 = vpop.permute.xlu0 %571
        %575 = vset.pattern.permute.xlu0 0
        %576 = vperm.xlu0 %575, %v553
        %v577 = vpop.permute.xlu0 %576
        %580 = vset.pattern.permute.xlu0 0
        %581 = vperm.xlu0 %580, %v554
        %v582 = vpop.permute.xlu0 %581
        %585 = vset.pattern.permute.xlu0 0
        %586 = vperm.xlu0 %585, %v555
        %v587 = vpop.permute.xlu0 %586
        %590 = vset.pattern.permute.xlu0 0
        %591 = vperm.xlu0 %590, %v556
        %v592 = vpop.permute.xlu0 %591
        %595 = vset.pattern.permute.xlu0 0
        %596 = vperm.xlu0 %595, %v557
        %v597 = vpop.permute.xlu0 %596
        %600 = vset.pattern.permute.xlu0 0
        %601 = vperm.xlu0 %600, %v558
        %v602 = vpop.permute.xlu0 %601
        %v612 = vunpack.c.l.b16 %v543
        %v613 = vunpack.c.l.b16 %v544
        %v614 = vunpack.c.l.b16 %v545
        %v615 = vunpack.c.l.b16 %v546
        %v616 = vunpack.c.l.b16 %v547
        %v617 = vunpack.c.l.b16 %v548
        %v618 = vunpack.c.l.b16 %v549
        %v619 = vunpack.c.l.b16 %v550
        %v620 = vpack.c.b16 %v613, %v612
        %v621 = vpack.c.b16 %v615, %v614
        %v622 = vpack.c.b16 %v617, %v616
        %v623 = vpack.c.b16 %v619, %v618
        %625 = vst [vmem:[#allocation1] ss:$4 sm:$0xff] %v563
        %v626 = vld.sshfl [vmem:[#allocation1] sm:$0xff pattern:$0x73625140]
        %v627 = vld.sshfl [vmem:[#allocation1 + $0x8] sm:$0xff pattern:$0x73625140]
        %vm628 = vcmask 31744
        %v630 = vsel %vm628, %v620, 0
        %v633 = vsel %vm628, %v621, 0
        %v636 = vsel %vm628, %v622, 0
        %v639 = vsel %vm628, %v623, 0
        %vm641 = vcmask 1041408
        %v642 = vsel %vm641, %v626, 0
        %v644 = vsel %vm641, %v627, 0
        %646 = vmatpush.bf16.msra.mxu0 0
        %647 = vmatpush.bf16.msra.mxu0 0
        %648 = vmatpush.bf16.msra.mxu0 0
        %649 = vmatpush.bf16.msra.mxu0 0
        %650 = vmatpush.bf16.msra.mxu0 0
        %651 = vmatpush.bf16.msra.mxu0 0
        %652 = vmatpush.bf16.msra.mxu0 0
        %653 = vmatpush.bf16.msra.mxu0 %v642
        %654 = vmatmul.bf16.gmra.mxu0 %v630
        %v655 = vpop.f32.mrf.mxu0
        %v656 = vadd.f32 %v567, %v655
        %v657 = vpop.f32.mrf.mxu0
        %v658 = vadd.f32 %v572, %v657
        %659 = vmatmul.bf16.gmra.mxu0 %v633
        %v660 = vpop.f32.mrf.mxu0
        %v661 = vadd.f32 %v577, %v660
        %v662 = vpop.f32.mrf.mxu0
        %v663 = vadd.f32 %v582, %v662
        %664 = vmatmul.bf16.gmra.mxu0 %v636
        %v665 = vpop.f32.mrf.mxu0
        %v666 = vadd.f32 %v587, %v665
        %v667 = vpop.f32.mrf.mxu0
        %v668 = vadd.f32 %v592, %v667
        %669 = vmatmul.bf16.gmra.mxu0 %v639
        %v670 = vpop.f32.mrf.mxu0
        %v671 = vadd.f32 %v597, %v670
        %v672 = vpop.f32.mrf.mxu0
        %v673 = vadd.f32 %v602, %v672
        %674 = vdwg.mxu0
        %675 = vmatpush.bf16.msra.mxu0 0
        %676 = vmatpush.bf16.msra.mxu0 0
        %677 = vmatpush.bf16.msra.mxu0 0
        %678 = vmatpush.bf16.msra.mxu0 0
        %679 = vmatpush.bf16.msra.mxu0 0
        %680 = vmatpush.bf16.msra.mxu0 0
        %681 = vmatpush.bf16.msra.mxu0 0
        %682 = vmatpush.bf16.msra.mxu0 %v644
        %683 = vmatmul.bf16.gmra.mxu0 %v630
        %v684 = vpop.f32.mrf.mxu0
        %v685 = vadd.f32 %v567, %v684
        %v686 = vpop.f32.mrf.mxu0
        %v687 = vadd.f32 %v572, %v686
        %688 = vmatmul.bf16.gmra.mxu0 %v633
        %v689 = vpop.f32.mrf.mxu0
        %v690 = vadd.f32 %v577, %v689
        %v691 = vpop.f32.mrf.mxu0
        %v692 = vadd.f32 %v582, %v691
        %693 = vmatmul.bf16.gmra.mxu0 %v636
        %v694 = vpop.f32.mrf.mxu0
        %v695 = vadd.f32 %v587, %v694
        %v696 = vpop.f32.mrf.mxu0
        %v697 = vadd.f32 %v592, %v696
        %698 = vmatmul.bf16.gmra.mxu0 %v639
        %v699 = vpop.f32.mrf.mxu0
        %v700 = vadd.f32 %v597, %v699
        %v701 = vpop.f32.mrf.mxu0
        %v702 = vadd.f32 %v602, %v701
        %703 = vdwg.mxu0
        %v704 = vmax.f32 %v656, 0.0
        %v705 = vmax.f32 %v685, 0.0
        %v706 = vmax.f32 %v658, 0.0
        %v707 = vmax.f32 %v687, 0.0
        %v708 = vmax.f32 %v661, 0.0
        %v709 = vmax.f32 %v690, 0.0
        %v710 = vmax.f32 %v663, 0.0
        %v711 = vmax.f32 %v692, 0.0
        %v712 = vmax.f32 %v666, 0.0
        %v713 = vmax.f32 %v695, 0.0
        %v714 = vmax.f32 %v668, 0.0
        %v715 = vmax.f32 %v697, 0.0
        %v716 = vmax.f32 %v671, 0.0
        %v717 = vmax.f32 %v700, 0.0
        %v718 = vmax.f32 %v673, 0.0
        %v719 = vmax.f32 %v702, 0.0
        %v720 = vpack.c.bf16 %v706, %v704
        %v721 = vpack.c.bf16 %v707, %v705
        %v722 = vpack.c.bf16 %v710, %v708
        %v723 = vpack.c.bf16 %v711, %v709
        %725 = vset.pattern.permute.xlu0 0
        %726 = vperm.xlu0 %725, %v561
        %v727 = vpop.permute.xlu0 %726
        %vm729 = vcmask 261120
        %v731 = vsel %vm729, %v559, 0
        %733 = vmatpush.bf16.msra.mxu0 0
        %734 = vmatpush.bf16.msra.mxu0 0
        %735 = vmatpush.bf16.msra.mxu0 0
        %736 = vmatpush.bf16.msra.mxu0 0
        %737 = vmatpush.bf16.msra.mxu0 0
        %738 = vmatpush.bf16.msra.mxu0 0
        %739 = vmatpush.bf16.msra.mxu0 %v722
        %740 = vmatpush.bf16.msra.mxu0 %v720
        %741 = vmatmul.bf16.gmra.mxu0 %v731
        %v742 = vpop.f32.mrf.mxu0
        %v743 = vadd.f32 %v727, %v742
        %v744 = vpop.f32.mrf.mxu0
        %745 = vdwg.mxu0
        %746 = vmatpush.bf16.msra.mxu0 0
        %747 = vmatpush.bf16.msra.mxu0 0
        %748 = vmatpush.bf16.msra.mxu0 0
        %749 = vmatpush.bf16.msra.mxu0 0
        %750 = vmatpush.bf16.msra.mxu0 0
        %751 = vmatpush.bf16.msra.mxu0 0
        %752 = vmatpush.bf16.msra.mxu0 %v723
        %753 = vmatpush.bf16.msra.mxu0 %v721
        %754 = vmatmul.bf16.gmra.mxu0 %v731
        %v755 = vpop.f32.mrf.mxu0
        %v756 = vadd.f32 %v727, %v755
        %v757 = vpop.f32.mrf.mxu0
        %758 = vdwg.mxu0
        %v759 = vpack.c.bf16 %v756, %v743
        %760 = vst [vmem:[%s492] sm:$0xff] %v759
        %v761 = vld [vmem:[%s529] sm:$0x3]
        %v762 = vrot.slane %v743, 4
        %v763 = vmax.f32 %v743, %v762
        %v764 = vrot.slane %v763, 2
        %v765 = vmax.f32 %v763, %v764
        %v766 = vrot.slane %v765, 1
        %v767 = vmax.f32 %v765, %v766
        %v768 = vrot.slane %v756, 4
        %v769 = vmax.f32 %v756, %v768
        %v770 = vrot.slane %v769, 2
        %v771 = vmax.f32 %v769, %v770
        %v772 = vrot.slane %v771, 1
        %v773 = vmax.f32 %v771, %v772
        %v774 = vsub.f32 %v743, %v767
        %v775 = vsub.f32 %v756, %v773
        %v776 = vmul.f32 %v774, 1.442695
        %v777 = vpow.pop %v776
        %v778 = vmul.f32 %v775, 1.442695
        %v779 = vpow.pop %v778
        %v780 = vrot.slane %v777, 4
        %v781 = vadd.f32 %v777, %v780
        %v782 = vrot.slane %v781, 2
        %v783 = vadd.f32 %v781, %v782
        %v784 = vrot.slane %v783, 1
        %v785 = vadd.f32 %v783, %v784
        %v786 = vrot.slane %v779, 4
        %v787 = vadd.f32 %v779, %v786
        %v788 = vrot.slane %v787, 2
        %v789 = vadd.f32 %v787, %v788
        %v790 = vrot.slane %v789, 1
        %v791 = vadd.f32 %v789, %v790
        %v792 = vlog2.pop %v785
        %v793 = vmul.f32 %v792, 0.6931472
        %v794 = vlog2.pop %v791
        %v795 = vmul.f32 %v794, 0.6931472
        %v796 = vadd.f32 %v793, %v767
        %v797 = vadd.f32 %v795, %v773
        %v798 = vlaneseq
        %v799 = vshrl.u32 %v798, 7
        %v800 = vperm.slane %v761, 0
        %v801 = vperm.slane %v761, 1
        %vm802 = vcmp.eq.s32.totalorder %v799, %v800
        %vm803 = vcmp.eq.s32.totalorder %v799, %v801
        %v804 = vsel %vm802, 1, 0
        %v805 = vsel %vm803, 1, 0
        %v806 = vcvt.s32.f32 %v804
        %v807 = vcvt.s32.f32 %v805
        %v808 = vmul.f32 %v743, %v806
        %v809 = vmul.f32 %v756, %v807
        %v810 = vrot.slane %v808, 4
        %v811 = vadd.f32 %v808, %v810
        %v812 = vrot.slane %v811, 2
        %v813 = vadd.f32 %v811, %v812
        %v814 = vrot.slane %v813, 1
        %v815 = vadd.f32 %v813, %v814
        %v816 = vrot.slane %v809, 4
        %v817 = vadd.f32 %v809, %v816
        %v818 = vrot.slane %v817, 2
        %v819 = vadd.f32 %v817, %v818
        %v820 = vrot.slane %v819, 1
        %v821 = vadd.f32 %v819, %v820
        %vm822 = vcmp.ge.s32.totalorder %v761, 0
        %vm823 = vcmp.lt.s32.totalorder %v761, 8
        %vm824 = vmand %vm822, %vm823
        %v825 = vsub.f32 %v796, %v815
        %v826 = vsub.f32 %v797, %v821
        %v829 = vrot.slane %v826, 7
        %vm830 = vcmask 1040384
        %v831 = vsel %vm830, %v825, %v829
        %v833 = vsel %vm824, %v831, 0.0
        %v835 = vperm.slane %v833, 0
        %v836 = vperm.slane %v833, 1
        %v839 = vsel %vm830, %v835, 0.0
        %v840 = vsel %vm830, %v836, 0.0
        %v841 = vadd.f32 %v839, %v840
        %842 = vadd.xlane.f32.xlu0 %v841
        %v843 = vpop.xlane.xlu0 %842
        %v844 = vrot.slane %v843, 4
        %v845 = vadd.f32 %v843, %v844
        %v846 = vrot.slane %v845, 2
        %v847 = vadd.f32 %v845, %v846
        %v848 = vrot.slane %v847, 1
        %v849 = vadd.f32 %v847, %v848
        %s850 = vtos %v849
        %s851 = sadd.f32 %s850, 0.0
        %v852 = vsel %vm824, 1, 0
        %v853 = vcvt.s32.f32 %v852
        %v855 = vperm.slane %v853, 0
        %v856 = vperm.slane %v853, 1
        %v859 = vsel %vm830, %v855, 0.0
        %v860 = vsel %vm830, %v856, 0.0
        %v861 = vadd.f32 %v859, %v860
        %862 = vadd.xlane.f32.xlu0 %v861
        %v863 = vpop.xlane.xlu0 %862
        %v864 = vrot.slane %v863, 4
        %v865 = vadd.f32 %v863, %v864
        %v866 = vrot.slane %v865, 2
        %v867 = vadd.f32 %v865, %v866
        %v868 = vrot.slane %v867, 1
        %v869 = vadd.f32 %v867, %v868
        %s870 = vtos %v869
        %s871 = sadd.f32 %s870, 0.0
        %v872 = vpack.c.bf16 %v714, %v712
        %v873 = vpack.c.bf16 %v715, %v713
        %v874 = vpack.c.bf16 %v718, %v716
        %v875 = vpack.c.bf16 %v719, %v717
        %877 = vset.pattern.permute.xlu0 0
        %878 = vperm.xlu0 %877, %v562
        %v879 = vpop.permute.xlu0 %878
        %v882 = vsel %vm729, %v560, 0
        %884 = vmatpush.bf16.msra.mxu0 0
        %885 = vmatpush.bf16.msra.mxu0 0
        %886 = vmatpush.bf16.msra.mxu0 0
        %887 = vmatpush.bf16.msra.mxu0 0
        %888 = vmatpush.bf16.msra.mxu0 0
        %889 = vmatpush.bf16.msra.mxu0 0
        %890 = vmatpush.bf16.msra.mxu0 %v874
        %891 = vmatpush.bf16.msra.mxu0 %v872
        %892 = vmatmul.bf16.gmra.mxu0 %v882
        %v893 = vpop.f32.mrf.mxu0
        %v894 = vadd.f32 %v879, %v893
        %v895 = vpop.f32.mrf.mxu0
        %896 = vdwg.mxu0
        %897 = vmatpush.bf16.msra.mxu0 0
        %898 = vmatpush.bf16.msra.mxu0 0
        %899 = vmatpush.bf16.msra.mxu0 0
        %900 = vmatpush.bf16.msra.mxu0 0
        %901 = vmatpush.bf16.msra.mxu0 0
        %902 = vmatpush.bf16.msra.mxu0 0
        %903 = vmatpush.bf16.msra.mxu0 %v875
        %904 = vmatpush.bf16.msra.mxu0 %v873
        %905 = vmatmul.bf16.gmra.mxu0 %v882
        %v906 = vpop.f32.mrf.mxu0
        %v907 = vadd.f32 %v879, %v906
        %v908 = vpop.f32.mrf.mxu0
        %909 = vdwg.mxu0
        %v910 = vpack.c.bf16 %v907, %v894
        %911 = vst [vmem:[%s499] sm:$0xff] %v910
        %v912 = vld [vmem:[%s538] sm:$0x3]
        %v913 = vrot.slane %v894, 4
        %v914 = vmax.f32 %v894, %v913
        %v915 = vrot.slane %v914, 2
        %v916 = vmax.f32 %v914, %v915
        %v917 = vrot.slane %v916, 1
        %v918 = vmax.f32 %v916, %v917
        %v919 = vrot.slane %v907, 4
        %v920 = vmax.f32 %v907, %v919
        %v921 = vrot.slane %v920, 2
        %v922 = vmax.f32 %v920, %v921
        %v923 = vrot.slane %v922, 1
        %v924 = vmax.f32 %v922, %v923
        %v925 = vsub.f32 %v894, %v918
        %v926 = vsub.f32 %v907, %v924
        %v927 = vmul.f32 %v925, 1.442695
        %v928 = vpow.pop %v927
        %v929 = vmul.f32 %v926, 1.442695
        %v930 = vpow.pop %v929
        %v931 = vrot.slane %v928, 4
        %v932 = vadd.f32 %v928, %v931
        %v933 = vrot.slane %v932, 2
        %v934 = vadd.f32 %v932, %v933
        %v935 = vrot.slane %v934, 1
        %v936 = vadd.f32 %v934, %v935
        %v937 = vrot.slane %v930, 4
        %v938 = vadd.f32 %v930, %v937
        %v939 = vrot.slane %v938, 2
        %v940 = vadd.f32 %v938, %v939
        %v941 = vrot.slane %v940, 1
        %v942 = vadd.f32 %v940, %v941
        %v943 = vlog2.pop %v936
        %v944 = vmul.f32 %v943, 0.6931472
        %v945 = vlog2.pop %v942
        %v946 = vmul.f32 %v945, 0.6931472
        %v947 = vadd.f32 %v944, %v918
        %v948 = vadd.f32 %v946, %v924
        %v949 = vperm.slane %v912, 0
        %v950 = vperm.slane %v912, 1
        %vm951 = vcmp.eq.s32.totalorder %v799, %v949
        %vm952 = vcmp.eq.s32.totalorder %v799, %v950
        %v953 = vsel %vm951, 1, 0
        %v954 = vsel %vm952, 1, 0
        %v955 = vcvt.s32.f32 %v953
        %v956 = vcvt.s32.f32 %v954
        %v957 = vmul.f32 %v894, %v955
        %v958 = vmul.f32 %v907, %v956
        %v959 = vrot.slane %v957, 4
        %v960 = vadd.f32 %v957, %v959
        %v961 = vrot.slane %v960, 2
        %v962 = vadd.f32 %v960, %v961
        %v963 = vrot.slane %v962, 1
        %v964 = vadd.f32 %v962, %v963
        %v965 = vrot.slane %v958, 4
        %v966 = vadd.f32 %v958, %v965
        %v967 = vrot.slane %v966, 2
        %v968 = vadd.f32 %v966, %v967
        %v969 = vrot.slane %v968, 1
        %v970 = vadd.f32 %v968, %v969
        %vm971 = vcmp.ge.s32.totalorder %v912, 0
        %vm972 = vcmp.lt.s32.totalorder %v912, 8
        %vm973 = vmand %vm971, %vm972
        %v974 = vsub.f32 %v947, %v964
        %v975 = vsub.f32 %v948, %v970
        %v978 = vrot.slane %v975, 7
        %v979 = vsel %vm830, %v974, %v978
        %v981 = vsel %vm973, %v979, 0.0
        %v983 = vperm.slane %v981, 0
        %v984 = vperm.slane %v981, 1
        %v987 = vsel %vm830, %v983, 0.0
        %v988 = vsel %vm830, %v984, 0.0
        %v989 = vadd.f32 %v987, %v988
        %990 = vadd.xlane.f32.xlu0 %v989
        %v991 = vpop.xlane.xlu0 %990
        %v992 = vrot.slane %v991, 4
        %v993 = vadd.f32 %v991, %v992
        %v994 = vrot.slane %v993, 2
        %v995 = vadd.f32 %v993, %v994
        %v996 = vrot.slane %v995, 1
        %v997 = vadd.f32 %v995, %v996
        %s998 = vtos %v997
        %s999 = sadd.f32 %s998, 0.0
        %v1000 = vsel %vm973, 1, 0
        %v1001 = vcvt.s32.f32 %v1000
        %v1003 = vperm.slane %v1001, 0
        %v1004 = vperm.slane %v1001, 1
        %v1007 = vsel %vm830, %v1003, 0.0
        %v1008 = vsel %vm830, %v1004, 0.0
        %v1009 = vadd.f32 %v1007, %v1008
        %1010 = vadd.xlane.f32.xlu0 %v1009
        %v1011 = vpop.xlane.xlu0 %1010
        %v1012 = vrot.slane %v1011, 4
        %v1013 = vadd.f32 %v1011, %v1012
        %v1014 = vrot.slane %v1013, 2
        %v1015 = vadd.f32 %v1013, %v1014
        %v1016 = vrot.slane %v1015, 1
        %v1017 = vadd.f32 %v1015, %v1016
        %s1018 = vtos %v1017
        %s1019 = sadd.f32 %s1018, 0.0
        %v1020 = vlaneseq
        %v1021 = vand.u32 %v1020, 127
        %vm1022 = vcmp.eq.s32.totalorder %v1021, 0
        %vm1023 = vcmp.eq.s32.totalorder %v1021, 1
        %v1024 = vstv %s871
        %v1025 = vsel %vm1023, %v1024, 0.0
        %v1026 = vstv %s851
        %v1027 = vsel %vm1022, %v1026, %v1025
        %1028 = vst [vmem:[%s505] sm:$0x1] %v1027
        %v1029 = vstv %s1019
        %v1030 = vsel %vm1023, %v1029, 0.0
        %v1031 = vstv %s999
        %v1032 = vsel %vm1022, %v1031, %v1030
        %1033 = vst [vmem:[%s511] sm:$0x1] %v1032
        %s1034 = sand.u32 %s265, 1
        %s1035 = scalar_lea.sflag [#allocation3], %s1034
        %s1036 = sand.u32 %s265, 1
        %s1037 = smul.addr %s1036, 8
        %s1038 = scalar_lea.vmem [#allocation2], %s1037
        %s1039 = sand.u32 %s33, 1
        %s1040 = scalar_lea.sflag [#allocation5], %s1039
        %s1041 = sand.u32 %s293, 1
        %s1042 = smul.addr %s1041, 8
        %s1043 = scalar_lea.vmem [#allocation4], %s1042
        %s1044 = sand.u32 %s33, 1
        %s1045 = scalar_lea.sflag [#allocation5], %s1044
        %s1046 = sand.u32 %s321, 1
        %s1047 = scalar_lea.vmem [#allocation6], %s1046
        %s1048 = sand.u32 %s349, 1
        %s1049 = scalar_lea.sflag [#allocation8], %s1048
        %s1050 = sand.u32 %s349, 1
        %s1051 = scalar_lea.vmem [#allocation7], %s1050
        // Predicated region
        $region57: #{tpu_custom_call.1} parent=55 // pred_check
          %p1052 = pneg %p275
        $region58: #{tpu_custom_call.1} parent=55 // pred_check_branch
          %1054 = sbr.rel (%p1052) target = $region60
        $region59: #{tpu_custom_call.1} parent=55 // pred_region
          %s1055 = smul.u32 2, %s38
          %1057 = vsyncadd %s1035, 0
          %s1058 = smul.addr %s37, 2
          %s1059 = sadd.s32 %s1055, %s1058
          %s1060 = smul.addr %s1059, 4
          %s1061 = scalar_lea.hbm %s9, %s1060
          %s1063 = sshll.u32 %s1038, 4
          %s1064 = int_to_ptr.vmem [resolvable:$true] %s1063
          %s1065 = sshll.u32 %s1061, 4
          %s1066 = int_to_ptr.hbm [resolvable:$true] %s1065
          %1068 = dma.vmem_to_hbm [thread:$0]  %s1064, 128, %s1066, %s1035
        $region60: #{tpu_custom_call.1} parent=55 // pred_fallthru
          _
        // Predicated region
        $region61: #{tpu_custom_call.1} parent=55 // pred_check
          %p1069 = pneg %p303
        $region62: #{tpu_custom_call.1} parent=55 // pred_check_branch
          %1071 = sbr.rel (%p1069) target = $region64
        $region63: #{tpu_custom_call.1} parent=55 // pred_region
          %s1072 = smul.u32 2, %s38
          %1074 = vsyncadd %s1040, 0
          %s1075 = smul.addr %s37, 2
          %s1076 = sadd.s32 %s1072, %s1075
          %s1077 = smul.addr %s1076, 4
          %s1078 = scalar_lea.hbm %s10, %s1077
          %s1080 = sshll.u32 %s1043, 4
          %s1081 = int_to_ptr.vmem [resolvable:$true] %s1080
          %s1082 = sshll.u32 %s1078, 4
          %s1083 = int_to_ptr.hbm [resolvable:$true] %s1082
          %1085 = dma.vmem_to_hbm [thread:$0]  %s1081, 128, %s1083, %s1040
        $region64: #{tpu_custom_call.1} parent=55 // pred_fallthru
          _
        // Predicated region
        $region65: #{tpu_custom_call.1} parent=55 // pred_check
          %p1086 = pneg %p331
        $region66: #{tpu_custom_call.1} parent=55 // pred_check_branch
          %1088 = sbr.rel (%p1086) target = $region68
        $region67: #{tpu_custom_call.1} parent=55 // pred_region
          %1090 = vsyncadd %s1045, 0
          %s1091 = sadd.s32 %s38, %s37
          %s1092 = scalar_lea.hbm %s11, %s1091
          %s1094 = sshll.u32 %s1047, 4
          %s1095 = int_to_ptr.vmem [resolvable:$true] %s1094
          %s1096 = sshll.u32 %s1092, 4
          %s1097 = int_to_ptr.hbm [resolvable:$true] %s1096
          %1099 = dma.vmem_to_hbm [thread:$0]  %s1095, 16, %s1097, %s1045
        $region68: #{tpu_custom_call.1} parent=55 // pred_fallthru
          _
        // Predicated region
        $region69: #{tpu_custom_call.1} parent=55 // pred_check
          %p1100 = pneg %p359
        $region70: #{tpu_custom_call.1} parent=55 // pred_check_branch
          %1102 = sbr.rel (%p1100) target = $region72
        $region71: #{tpu_custom_call.1} parent=55 // pred_region
          %1104 = vsyncadd %s1049, 0
          %s1105 = sadd.s32 %s38, %s37
          %s1106 = scalar_lea.hbm %s12, %s1105
          %s1108 = sshll.u32 %s1051, 4
          %s1109 = int_to_ptr.vmem [resolvable:$true] %s1108
          %s1110 = sshll.u32 %s1106, 4
          %s1111 = int_to_ptr.hbm [resolvable:$true] %s1110
          %1113 = dma.vmem_to_hbm [thread:$0]  %s1109, 16, %s1111, %s1049
        $region72: #{tpu_custom_call.1} parent=55 // pred_fallthru
          _
      $region56: #{tpu_custom_call.1} parent=5 // pred_fallthru
        _
      %p1114 = scmp.le.s32.totalorder 2, %s28
      // Predicated region
      $region73: #{tpu_custom_call.1} parent=5 // pred_check
        %p1115 = pneg %p1114
      $region74: #{tpu_custom_call.1} parent=5 // pred_check_branch
        %1117 = sbr.rel (%p1115) target = $region76
      $region75: #{tpu_custom_call.1} parent=5 // pred_region
        %s1118 = ssub.s32 %s28, 2
        // Predicated region
        $region77: #{tpu_custom_call.1} parent=75 // pred_check
          %p1119 = pneg %p281
        $region78: #{tpu_custom_call.1} parent=75 // pred_check_branch
          %1121 = sbr.rel (%p1119) target = $region80
        $region79: #{tpu_custom_call.1} parent=75 // pred_region
          %s1122 = sand.u32 %s266, 1
          %s1123 = scalar_lea.sflag [#allocation3], %s1122
          %s1124 = sand.u32 %s266, 1
          %s1125 = smul.addr %s1124, 8
          %s1126 = scalar_lea.vmem [#allocation2], %s1125
          %1128 = dma.done %s1123, 128
        $region80: #{tpu_custom_call.1} parent=75 // pred_fallthru
          _
        // Predicated region
        $region81: #{tpu_custom_call.1} parent=75 // pred_check
          %p1129 = pneg %p309
        $region82: #{tpu_custom_call.1} parent=75 // pred_check_branch
          %1131 = sbr.rel (%p1129) target = $region84
        $region83: #{tpu_custom_call.1} parent=75 // pred_region
          %s1132 = sand.u32 %s34, 1
          %s1133 = scalar_lea.sflag [#allocation5], %s1132
          %s1134 = sand.u32 %s294, 1
          %s1135 = smul.addr %s1134, 8
          %s1136 = scalar_lea.vmem [#allocation4], %s1135
          %1138 = dma.done %s1133, 128
        $region84: #{tpu_custom_call.1} parent=75 // pred_fallthru
          _
        // Predicated region
        $region85: #{tpu_custom_call.1} parent=75 // pred_check
          %p1139 = pneg %p337
        $region86: #{tpu_custom_call.1} parent=75 // pred_check_branch
          %1141 = sbr.rel (%p1139) target = $region88
        $region87: #{tpu_custom_call.1} parent=75 // pred_region
          %s1142 = sand.u32 %s34, 1
          %s1143 = scalar_lea.sflag [#allocation5], %s1142
          %s1144 = sand.u32 %s322, 1
          %s1145 = scalar_lea.vmem [#allocation6], %s1144
          %1147 = dma.done %s1143, 16
        $region88: #{tpu_custom_call.1} parent=75 // pred_fallthru
          _
        // Predicated region
        $region89: #{tpu_custom_call.1} parent=75 // pred_check
          %p1148 = pneg %p365
        $region90: #{tpu_custom_call.1} parent=75 // pred_check_branch
          %1150 = sbr.rel (%p1148) target = $region92
        $region91: #{tpu_custom_call.1} parent=75 // pred_region
          %s1151 = sand.u32 %s350, 1
          %s1152 = scalar_lea.sflag [#allocation8], %s1151
          %s1153 = sand.u32 %s350, 1
          %s1154 = scalar_lea.vmem [#allocation7], %s1153
          %1156 = dma.done %s1152, 16
        $region92: #{tpu_custom_call.1} parent=75 // pred_fallthru
          _
      $region76: #{tpu_custom_call.1} parent=5 // pred_fallthru
        _
    $region6: #{tpu_custom_call.1} parent=1 // loop_footer
      %s32 = sadd.s32 1, %s28
    $region7: #{tpu_custom_call.1} parent=1 // loop_footer_branch
      %27 = sbr.rel target = $region3
    $region8: #{tpu_custom_call.1} parent=1 // loop_exit
      _
    %1157 = vsyncpa [#allocation3], 1
    %s1158 = scalar_lea.sflag [#allocation3], 1
    %1159 = vsyncpa %s1158, 1
    %1160 = vsyncpa [#allocation5], 1
    %s1161 = scalar_lea.sflag [#allocation5], 1
    %1162 = vsyncpa %s1161, 1
    %1163 = vsyncpa [#allocation8], 1
    %s1164 = scalar_lea.sflag [#allocation8], 1
    %1165 = vsyncpa %s1164, 1

</llo_original>
